<compile_context>
chip_gen: v7x
topology: tpu7x:2x2x1
jax: 0.10.0
libtpu: 0.0.40
codegen_flags: <defaults>
</compile_context>

<pallas_src>
import jax
import jax.numpy as jnp
from jax.experimental import pallas as pl
from jax.experimental.pallas import tpu as pltpu


def _round_up(x, m):
    return ((x + m - 1) // m) * m


def _vmem_capacity_bytes():
    """Physical VMEM per TensorCore; conservative fallback if the query fails."""
    try:
        cap = int(pltpu.get_tpu_info().vmem_capacity_bytes)
        if cap > 0:
            return cap
    except Exception:
        pass
    return 64 * 1024 * 1024  # v7x per-TC size; safe lower bound everywhere


def _pick_relation_tile(dr, max_tile=64, step_overhead_relations=6):
    """Multiple of 8 (<= max_tile) minimizing relation padding + per-grid-step
    overhead (each relation-chunk grid step costs roughly a handful of
    relation-matmuls worth of pipeline overhead)."""
    best_t, best_cost = 8, None
    t = 8
    while t <= max_tile:
        dr_p = _round_up(dr, t)
        cost = dr_p + step_overhead_relations * (dr_p // t)
        if best_cost is None or cost < best_cost:
            best_t, best_cost = t, cost
        t += 8
    return best_t


def _make_kernel(relation_tile, w_resident, compute_dtype):
    def kernel(h_ref, r_ref, w_ref, o_ref, acc_ref):
        # h_ref:  (bt, de_p)                 -- batch tile of entity embeddings
        # r_ref:  (bt, rt) f32               -- batch tile x relation chunk
        # w_ref:  (dr_p|rt, de_p, de_p)      -- resident full W / streamed chunk
        # o_ref:  (bt, de_p)                 -- output tile
        # acc_ref:(bt, de_p) f32             -- VMEM accumulator (persists over k)
        k = pl.program_id(1)

        @pl.when(k == 0)
        def _init():
            acc_ref[...] = jnp.zeros_like(acc_ref)

        h = h_ref[...].astype(compute_dtype)   # cast the MXU operand once
        r = r_ref[...]                         # (bt, rt), stays f32
        base = k * relation_tile if w_resident else 0

        # Static unrolled per-relation loop: one MXU matmul per relation,
        # f32 row-scale + accumulate on the VPU.  No large intermediates,
        # no relayouts (r[:, c:c+1] is a static lane slice + lane broadcast).
        partial = jnp.zeros_like(acc_ref)
        for c in range(relation_tile):
            y = jnp.dot(h, w_ref[base + c], preferred_element_type=jnp.float32)
            partial = partial + r[:, c:c + 1] * y
        acc_ref[...] += partial

        @pl.when(k == pl.num_programs(1) - 1)
        def _fin():
            o_ref[...] = acc_ref[...].astype(o_ref.dtype)

    return kernel


def make_core_tucker(W, *, compute_dtype=jnp.float32, batch_tile=256,
                     relation_tile=None):
    """Prepare W once (pad + cast, hoisted out of the per-call path) and return
    a jitted forward(h, r) -> t implementing CoreTuckER.forward (eval mode).

    compute_dtype=jnp.bfloat16 runs the MXU matmuls in bf16 with f32
    accumulation (recommended on v6e/v7x); results then match the f32
    reference only to ~1e-3 relative.
    """
    dr, de, de2 = W.shape
    assert de == de2, "W must be (relation_dim, entity_dim, entity_dim)"

    de_p = _round_up(de, 128)                   # lane-dense output / W columns
    if relation_tile is None:
        relation_tile = _pick_relation_tile(dr)
    relation_tile = max(8, _round_up(int(relation_tile), 8))

    w_itemsize = jnp.dtype(compute_dtype).itemsize
    cap = _vmem_capacity_bytes()
    batch_tile = max(8, _round_up(int(batch_tile), 8))

    # ---- resident-W decision (budget 2 buffers: BlockSpec double-buffers) ----
    dr_p_res = _round_up(dr, relation_tile)
    w_res_bytes = 2 * dr_p_res * de_p * de_p * w_itemsize
    other_bytes = (2 * batch_tile * de_p * 4            # h (double-buffered)
                   + 2 * batch_tile * de_p * 4          # out
                   + 2 * batch_tile * relation_tile * 4  # r chunk
                   + batch_tile * de_p * 4              # f32 accumulator
                   + 8 * batch_tile * de_p * 4          # in-kernel temporaries
                   + (4 << 20))                         # slack
    w_resident = (w_res_bytes + other_bytes) <= cap - (8 << 20)

    if not w_resident:
        # Stream W in (relation_tile, de_p, de_p) chunks, sized off device VMEM.
        chunk_budget = min(48 << 20, max(8 << 20, int(0.3 * cap)))
        rt_cap = max(8, (chunk_budget // (2 * de_p * de_p * w_itemsize)) // 8 * 8)
        relation_tile = min(relation_tile, int(rt_cap))

    dr_p = _round_up(dr, relation_tile)
    num_rel = dr_p // relation_tile

    # W is a parameter: pad + cast ONCE here (not per forward call).
    W_prep = jnp.pad(
        W, ((0, dr_p - dr), (0, de_p - de), (0, de_p - de))).astype(compute_dtype)

    kernel = _make_kernel(relation_tile, w_resident, compute_dtype)

    w_block_rows = dr_p if w_resident else relation_tile
    if w_resident:
        w_index_map = lambda i, k: (0, 0, 0)      # fetched once, stays in VMEM
    else:
        w_index_map = lambda i, k: (k, 0, 0)      # streamed per relation chunk

    @jax.jit
    def forward(h, r):
        B, de_in = h.shape
        assert de_in == de and r.shape == (B, dr)

        bt = min(batch_tile, _round_up(B, 8))
        bt = max(8, _round_up(bt, 8))
        B_p = _round_up(B, bt)

        h_p = jnp.pad(h, ((0, B_p - B), (0, de_p - de)))
        r_p = jnp.pad(r, ((0, B_p - B), (0, dr_p - dr)))
        # (num_rel, B_p, rt): each relation-chunk grid step reads one chunk with
        # a legal full-last-dim block.  r is tiny, so this reshape/transpose is
        # negligible next to the matmuls.
        r_chunks = r_p.reshape(B_p, num_rel, relation_tile).transpose(1, 0, 2)

        # Explicit VMEM budget, clamped to physical VMEM minus headroom.
        est = (2 * w_block_rows * de_p * de_p * w_itemsize
               + 2 * bt * de_p * 4 + 2 * bt * de_p * 4
               + 2 * bt * relation_tile * 4
               + bt * de_p * 4
               + 8 * bt * de_p * 4
               + (4 << 20))
        vmem_limit = int(min(max(est, 16 << 20), cap - (2 << 20)))

        grid = (B_p // bt, num_rel)

        out_p = pl.pallas_call(
            kernel,
            out_shape=jax.ShapeDtypeStruct((B_p, de_p), h.dtype),
            grid_spec=pltpu.PrefetchScalarGridSpec(
                num_scalar_prefetch=0,
                grid=grid,
                in_specs=[
                    pl.BlockSpec((bt, de_p), lambda i, k: (i, 0)),
                    pl.BlockSpec((None, bt, relation_tile),
                                 lambda i, k: (k, i, 0)),
                    pl.BlockSpec((w_block_rows, de_p, de_p), w_index_map),
                ],
                out_specs=pl.BlockSpec((bt, de_p), lambda i, k: (i, 0)),
                scratch_shapes=[pltpu.VMEM((bt, de_p), jnp.float32)],
            ),
            compiler_params=pltpu.CompilerParams(
                dimension_semantics=("parallel", "arbitrary"),
                vmem_limit_bytes=vmem_limit,
            ),
        )(h_p, r_chunks, W_prep)

        return out_p[:B, :de]

    return forward


def core_tucker_forward(h, r, W, **kwargs):
    """One-shot convenience wrapper.  Prefer make_core_tucker(W) to hoist the
    W padding/cast out of the per-call path."""
    return make_core_tucker(W, **kwargs)(h, r)


def core_tucker_reference(h, r, W):
    B, de = h.shape
    dr = r.shape[1]
    wr = jnp.matmul(r, W.reshape(dr, de * de),
                    precision=jax.lax.Precision.HIGHEST).reshape(B, de, de)
    return jnp.einsum("bi,bij->bj", h, wr,
                      precision=jax.lax.Precision.HIGHEST)


if __name__ == "__main__":
    entity_dim = 32
    relation_dim = 16
    batch = 8

    key = jax.random.PRNGKey(0)
    k_w, k_h, k_r = jax.random.split(key, 3)

    # Matches nn.Parameter(uniform(-0.01, 0.01, (dr, de, de))) in __init__.
    W = jax.random.uniform(
        k_w, (relation_dim, entity_dim, entity_dim),
        minval=-0.01, maxval=0.01, dtype=jnp.float32)
    h = jax.random.normal(k_h, (batch, entity_dim), dtype=jnp.float32)
    r = jax.random.normal(k_r, (batch, relation_dim), dtype=jnp.float32)

    t_ref = core_tucker_reference(h, r, W)

    # f32 MXU path (W prepared once, forward reused).
    fwd_f32 = make_core_tucker(W, compute_dtype=jnp.float32)
    t = jax.block_until_ready(fwd_f32(h, r))
    assert t.shape == (batch, entity_dim)
    assert jnp.allclose(t, t_ref, atol=1e-4, rtol=1e-4)

    # bf16 operands, f32 accumulation (v6e/v7x fast path).
    fwd_bf16 = make_core_tucker(W, compute_dtype=jnp.bfloat16)
    t_bf16 = jax.block_until_ready(fwd_bf16(h, r))
    assert t_bf16.shape == (batch, entity_dim)
    assert jnp.allclose(t_bf16, t_ref, atol=1e-2, rtol=1e-2)

    print("KERNEL_OK")
</pallas_src>

<mosaic_0001>
module attributes {stable_mosaic.version = 11 : i64} {
  func.func @kernel(%arg0: i32, %arg1: i32, %arg2: memref<8x128xf32, #tpu.memory_space<vmem>>, %arg3: memref<1x8x16xf32, #tpu.memory_space<vmem>>, %arg4: memref<16x128x128xf32, #tpu.memory_space<vmem>>, %arg5: memref<8x128xf32, #tpu.memory_space<vmem>>, %arg6: memref<8x128xf32, #tpu.memory_space<vmem>>) attributes {dimension_semantics = [#tpu.dimension_semantics<parallel>, #tpu.dimension_semantics<arbitrary>], iteration_bounds = array<i64: 1, 1>, scalar_prefetch = 0 : i64, scratch_operands = 1 : i64, tpu.core_type = #tpu.core_type<tc>, window_params = [{transform_indices = @transform_0, window_bounds = array<i64: 8, 128>}, {transform_indices = @transform_1, window_bounds = array<i64: 1, 8, 16>}, {pipeline_mode = #tpu.pipeline_mode<synchronous>, transform_indices = @transform_2, window_bounds = array<i64: 16, 128, 128>}, {transform_indices = @transform_3, window_bounds = array<i64: 8, 128>}]} {
    %c0_i32 = arith.constant 0 : i32
    %0 = arith.cmpi eq, %arg1, %c0_i32 : i32
    %1 = arith.extui %0 : i1 to i32
    %c0_i32_0 = arith.constant 0 : i32
    %2 = arith.cmpi ne, %1, %c0_i32_0 : i32
    scf.if %2 {
      %cst_60 = arith.constant 0.000000e+00 : f32
      %158 = vector.broadcast %cst_60 : f32 to vector<8x128xf32>
      %c0_61 = arith.constant 0 : index
      %c0_62 = arith.constant 0 : index
      %159 = vector.load %arg6[%c0_61, %c0_62] : memref<8x128xf32, #tpu.memory_space<vmem>>, vector<8x128xf32>
      tpu.vector_store %arg6[%c0_61, %c0_62], %158 {strides = array<i32>} : memref<8x128xf32, #tpu.memory_space<vmem>>, vector<8x128xf32>,
    } else {
    }
    %c0 = arith.constant 0 : index
    %c0_1 = arith.constant 0 : index
    %3 = vector.load %arg2[%c0, %c0_1] : memref<8x128xf32, #tpu.memory_space<vmem>>, vector<8x128xf32>
    %c0_2 = arith.constant 0 : index
    %c0_3 = arith.constant 0 : index
    %c0_4 = arith.constant 0 : index
    %4 = vector.load %arg3[%c0_2, %c0_3, %c0_4] : memref<1x8x16xf32, #tpu.memory_space<vmem>>, vector<1x8x16xf32>
    %5 = vector.shape_cast %4 : vector<1x8x16xf32> to vector<8x16xf32>
    %c16_i32 = arith.constant 16 : i32
    %6 = arith.muli %arg1, %c16_i32 : i32
    %cst = arith.constant 0.000000e+00 : f32
    %7 = vector.broadcast %cst : f32 to vector<8x128xf32>
    %c0_i32_5 = arith.constant 0 : i32
    %8 = arith.addi %6, %c0_i32_5 : i32
    %9 = arith.index_cast %8 : i32 to index
    %c0_6 = arith.constant 0 : index
    %c0_7 = arith.constant 0 : index
    %10 = vector.load %arg4[%9, %c0_6, %c0_7] : memref<16x128x128xf32, #tpu.memory_space<vmem>>, vector<1x128x128xf32>
    %11 = vector.shape_cast %10 : vector<1x128x128xf32> to vector<128x128xf32>
    %cst_8 = arith.constant dense<0.000000e+00> : vector<8x128xf32>
    %12 = tpu.matmul %3, %11, %cst_8 {dimension_numbers = #tpu.dot_dimension_numbers<[1], [0], [0], [1], [0, 0, 1, 1], [], []>} : vector<8x128xf32>, vector<128x128xf32>, vector<8x128xf32> -> vector<8x128xf32>
    %13 = vector.extract_strided_slice %5 {offsets = [0, 0], sizes = [8, 1], strides = [1, 1]} : vector<8x16xf32> to vector<8x1xf32>
    %14 = vector.broadcast %13 : vector<8x1xf32> to vector<8x128xf32>
    %15 = arith.mulf %14, %12 : vector<8x128xf32>
    %16 = arith.addf %7, %15 : vector<8x128xf32>
    %c1_i32 = arith.constant 1 : i32
    %17 = arith.addi %6, %c1_i32 : i32
    %18 = arith.index_cast %17 : i32 to index
    %c0_9 = arith.constant 0 : index
    %c0_10 = arith.constant 0 : index
    %19 = vector.load %arg4[%18, %c0_9, %c0_10] : memref<16x128x128xf32, #tpu.memory_space<vmem>>, vector<1x128x128xf32>
    %20 = vector.shape_cast %19 : vector<1x128x128xf32> to vector<128x128xf32>
    %cst_11 = arith.constant dense<0.000000e+00> : vector<8x128xf32>
    %21 = tpu.matmul %3, %20, %cst_11 {dimension_numbers = #tpu.dot_dimension_numbers<[1], [0], [0], [1], [0, 0, 1, 1], [], []>} : vector<8x128xf32>, vector<128x128xf32>, vector<8x128xf32> -> vector<8x128xf32>
    %22 = vector.extract_strided_slice %5 {offsets = [0, 1], sizes = [8, 1], strides = [1, 1]} : vector<8x16xf32> to vector<8x1xf32>
    %23 = vector.broadcast %22 : vector<8x1xf32> to vector<8x128xf32>
    %24 = arith.mulf %23, %21 : vector<8x128xf32>
    %25 = arith.addf %16, %24 : vector<8x128xf32>
    %c2_i32 = arith.constant 2 : i32
    %26 = arith.addi %6, %c2_i32 : i32
    %27 = arith.index_cast %26 : i32 to index
    %c0_12 = arith.constant 0 : index
    %c0_13 = arith.constant 0 : index
    %28 = vector.load %arg4[%27, %c0_12, %c0_13] : memref<16x128x128xf32, #tpu.memory_space<vmem>>, vector<1x128x128xf32>
    %29 = vector.shape_cast %28 : vector<1x128x128xf32> to vector<128x128xf32>
    %cst_14 = arith.constant dense<0.000000e+00> : vector<8x128xf32>
    %30 = tpu.matmul %3, %29, %cst_14 {dimension_numbers = #tpu.dot_dimension_numbers<[1], [0], [0], [1], [0, 0, 1, 1], [], []>} : vector<8x128xf32>, vector<128x128xf32>, vector<8x128xf32> -> vector<8x128xf32>
    %31 = vector.extract_strided_slice %5 {offsets = [0, 2], sizes = [8, 1], strides = [1, 1]} : vector<8x16xf32> to vector<8x1xf32>
    %32 = vector.broadcast %31 : vector<8x1xf32> to vector<8x128xf32>
    %33 = arith.mulf %32, %30 : vector<8x128xf32>
    %34 = arith.addf %25, %33 : vector<8x128xf32>
    %c3_i32 = arith.constant 3 : i32
    %35 = arith.addi %6, %c3_i32 : i32
    %36 = arith.index_cast %35 : i32 to index
    %c0_15 = arith.constant 0 : index
    %c0_16 = arith.constant 0 : index
    %37 = vector.load %arg4[%36, %c0_15, %c0_16] : memref<16x128x128xf32, #tpu.memory_space<vmem>>, vector<1x128x128xf32>
    %38 = vector.shape_cast %37 : vector<1x128x128xf32> to vector<128x128xf32>
    %cst_17 = arith.constant dense<0.000000e+00> : vector<8x128xf32>
    %39 = tpu.matmul %3, %38, %cst_17 {dimension_numbers = #tpu.dot_dimension_numbers<[1], [0], [0], [1], [0, 0, 1, 1], [], []>} : vector<8x128xf32>, vector<128x128xf32>, vector<8x128xf32> -> vector<8x128xf32>
    %40 = vector.extract_strided_slice %5 {offsets = [0, 3], sizes = [8, 1], strides = [1, 1]} : vector<8x16xf32> to vector<8x1xf32>
    %41 = vector.broadcast %40 : vector<8x1xf32> to vector<8x128xf32>
    %42 = arith.mulf %41, %39 : vector<8x128xf32>
    %43 = arith.addf %34, %42 : vector<8x128xf32>
    %c4_i32 = arith.constant 4 : i32
    %44 = arith.addi %6, %c4_i32 : i32
    %45 = arith.index_cast %44 : i32 to index
    %c0_18 = arith.constant 0 : index
    %c0_19 = arith.constant 0 : index
    %46 = vector.load %arg4[%45, %c0_18, %c0_19] : memref<16x128x128xf32, #tpu.memory_space<vmem>>, vector<1x128x128xf32>
    %47 = vector.shape_cast %46 : vector<1x128x128xf32> to vector<128x128xf32>
    %cst_20 = arith.constant dense<0.000000e+00> : vector<8x128xf32>
    %48 = tpu.matmul %3, %47, %cst_20 {dimension_numbers = #tpu.dot_dimension_numbers<[1], [0], [0], [1], [0, 0, 1, 1], [], []>} : vector<8x128xf32>, vector<128x128xf32>, vector<8x128xf32> -> vector<8x128xf32>
    %49 = vector.extract_strided_slice %5 {offsets = [0, 4], sizes = [8, 1], strides = [1, 1]} : vector<8x16xf32> to vector<8x1xf32>
    %50 = vector.broadcast %49 : vector<8x1xf32> to vector<8x128xf32>
    %51 = arith.mulf %50, %48 : vector<8x128xf32>
    %52 = arith.addf %43, %51 : vector<8x128xf32>
    %c5_i32 = arith.constant 5 : i32
    %53 = arith.addi %6, %c5_i32 : i32
    %54 = arith.index_cast %53 : i32 to index
    %c0_21 = arith.constant 0 : index
    %c0_22 = arith.constant 0 : index
    %55 = vector.load %arg4[%54, %c0_21, %c0_22] : memref<16x128x128xf32, #tpu.memory_space<vmem>>, vector<1x128x128xf32>
    %56 = vector.shape_cast %55 : vector<1x128x128xf32> to vector<128x128xf32>
    %cst_23 = arith.constant dense<0.000000e+00> : vector<8x128xf32>
    %57 = tpu.matmul %3, %56, %cst_23 {dimension_numbers = #tpu.dot_dimension_numbers<[1], [0], [0], [1], [0, 0, 1, 1], [], []>} : vector<8x128xf32>, vector<128x128xf32>, vector<8x128xf32> -> vector<8x128xf32>
    %58 = vector.extract_strided_slice %5 {offsets = [0, 5], sizes = [8, 1], strides = [1, 1]} : vector<8x16xf32> to vector<8x1xf32>
    %59 = vector.broadcast %58 : vector<8x1xf32> to vector<8x128xf32>
    %60 = arith.mulf %59, %57 : vector<8x128xf32>
    %61 = arith.addf %52, %60 : vector<8x128xf32>
    %c6_i32 = arith.constant 6 : i32
    %62 = arith.addi %6, %c6_i32 : i32
    %63 = arith.index_cast %62 : i32 to index
    %c0_24 = arith.constant 0 : index
    %c0_25 = arith.constant 0 : index
    %64 = vector.load %arg4[%63, %c0_24, %c0_25] : memref<16x128x128xf32, #tpu.memory_space<vmem>>, vector<1x128x128xf32>
    %65 = vector.shape_cast %64 : vector<1x128x128xf32> to vector<128x128xf32>
    %cst_26 = arith.constant dense<0.000000e+00> : vector<8x128xf32>
    %66 = tpu.matmul %3, %65, %cst_26 {dimension_numbers = #tpu.dot_dimension_numbers<[1], [0], [0], [1], [0, 0, 1, 1], [], []>} : vector<8x128xf32>, vector<128x128xf32>, vector<8x128xf32> -> vector<8x128xf32>
    %67 = vector.extract_strided_slice %5 {offsets = [0, 6], sizes = [8, 1], strides = [1, 1]} : vector<8x16xf32> to vector<8x1xf32>
    %68 = vector.broadcast %67 : vector<8x1xf32> to vector<8x128xf32>
    %69 = arith.mulf %68, %66 : vector<8x128xf32>
    %70 = arith.addf %61, %69 : vector<8x128xf32>
    %c7_i32 = arith.constant 7 : i32
    %71 = arith.addi %6, %c7_i32 : i32
    %72 = arith.index_cast %71 : i32 to index
    %c0_27 = arith.constant 0 : index
    %c0_28 = arith.constant 0 : index
    %73 = vector.load %arg4[%72, %c0_27, %c0_28] : memref<16x128x128xf32, #tpu.memory_space<vmem>>, vector<1x128x128xf32>
    %74 = vector.shape_cast %73 : vector<1x128x128xf32> to vector<128x128xf32>
    %cst_29 = arith.constant dense<0.000000e+00> : vector<8x128xf32>
    %75 = tpu.matmul %3, %74, %cst_29 {dimension_numbers = #tpu.dot_dimension_numbers<[1], [0], [0], [1], [0, 0, 1, 1], [], []>} : vector<8x128xf32>, vector<128x128xf32>, vector<8x128xf32> -> vector<8x128xf32>
    %76 = vector.extract_strided_slice %5 {offsets = [0, 7], sizes = [8, 1], strides = [1, 1]} : vector<8x16xf32> to vector<8x1xf32>
    %77 = vector.broadcast %76 : vector<8x1xf32> to vector<8x128xf32>
    %78 = arith.mulf %77, %75 : vector<8x128xf32>
    %79 = arith.addf %70, %78 : vector<8x128xf32>
    %c8_i32 = arith.constant 8 : i32
    %80 = arith.addi %6, %c8_i32 : i32
    %81 = arith.index_cast %80 : i32 to index
    %c0_30 = arith.constant 0 : index
    %c0_31 = arith.constant 0 : index
    %82 = vector.load %arg4[%81, %c0_30, %c0_31] : memref<16x128x128xf32, #tpu.memory_space<vmem>>, vector<1x128x128xf32>
    %83 = vector.shape_cast %82 : vector<1x128x128xf32> to vector<128x128xf32>
    %cst_32 = arith.constant dense<0.000000e+00> : vector<8x128xf32>
    %84 = tpu.matmul %3, %83, %cst_32 {dimension_numbers = #tpu.dot_dimension_numbers<[1], [0], [0], [1], [0, 0, 1, 1], [], []>} : vector<8x128xf32>, vector<128x128xf32>, vector<8x128xf32> -> vector<8x128xf32>
    %85 = vector.extract_strided_slice %5 {offsets = [0, 8], sizes = [8, 1], strides = [1, 1]} : vector<8x16xf32> to vector<8x1xf32>
    %86 = vector.broadcast %85 : vector<8x1xf32> to vector<8x128xf32>
    %87 = arith.mulf %86, %84 : vector<8x128xf32>
    %88 = arith.addf %79, %87 : vector<8x128xf32>
    %c9_i32 = arith.constant 9 : i32
    %89 = arith.addi %6, %c9_i32 : i32
    %90 = arith.index_cast %89 : i32 to index
    %c0_33 = arith.constant 0 : index
    %c0_34 = arith.constant 0 : index
    %91 = vector.load %arg4[%90, %c0_33, %c0_34] : memref<16x128x128xf32, #tpu.memory_space<vmem>>, vector<1x128x128xf32>
    %92 = vector.shape_cast %91 : vector<1x128x128xf32> to vector<128x128xf32>
    %cst_35 = arith.constant dense<0.000000e+00> : vector<8x128xf32>
    %93 = tpu.matmul %3, %92, %cst_35 {dimension_numbers = #tpu.dot_dimension_numbers<[1], [0], [0], [1], [0, 0, 1, 1], [], []>} : vector<8x128xf32>, vector<128x128xf32>, vector<8x128xf32> -> vector<8x128xf32>
    %94 = vector.extract_strided_slice %5 {offsets = [0, 9], sizes = [8, 1], strides = [1, 1]} : vector<8x16xf32> to vector<8x1xf32>
    %95 = vector.broadcast %94 : vector<8x1xf32> to vector<8x128xf32>
    %96 = arith.mulf %95, %93 : vector<8x128xf32>
    %97 = arith.addf %88, %96 : vector<8x128xf32>
    %c10_i32 = arith.constant 10 : i32
    %98 = arith.addi %6, %c10_i32 : i32
    %99 = arith.index_cast %98 : i32 to index
    %c0_36 = arith.constant 0 : index
    %c0_37 = arith.constant 0 : index
    %100 = vector.load %arg4[%99, %c0_36, %c0_37] : memref<16x128x128xf32, #tpu.memory_space<vmem>>, vector<1x128x128xf32>
    %101 = vector.shape_cast %100 : vector<1x128x128xf32> to vector<128x128xf32>
    %cst_38 = arith.constant dense<0.000000e+00> : vector<8x128xf32>
    %102 = tpu.matmul %3, %101, %cst_38 {dimension_numbers = #tpu.dot_dimension_numbers<[1], [0], [0], [1], [0, 0, 1, 1], [], []>} : vector<8x128xf32>, vector<128x128xf32>, vector<8x128xf32> -> vector<8x128xf32>
    %103 = vector.extract_strided_slice %5 {offsets = [0, 10], sizes = [8, 1], strides = [1, 1]} : vector<8x16xf32> to vector<8x1xf32>
    %104 = vector.broadcast %103 : vector<8x1xf32> to vector<8x128xf32>
    %105 = arith.mulf %104, %102 : vector<8x128xf32>
    %106 = arith.addf %97, %105 : vector<8x128xf32>
    %c11_i32 = arith.constant 11 : i32
    %107 = arith.addi %6, %c11_i32 : i32
    %108 = arith.index_cast %107 : i32 to index
    %c0_39 = arith.constant 0 : index
    %c0_40 = arith.constant 0 : index
    %109 = vector.load %arg4[%108, %c0_39, %c0_40] : memref<16x128x128xf32, #tpu.memory_space<vmem>>, vector<1x128x128xf32>
    %110 = vector.shape_cast %109 : vector<1x128x128xf32> to vector<128x128xf32>
    %cst_41 = arith.constant dense<0.000000e+00> : vector<8x128xf32>
    %111 = tpu.matmul %3, %110, %cst_41 {dimension_numbers = #tpu.dot_dimension_numbers<[1], [0], [0], [1], [0, 0, 1, 1], [], []>} : vector<8x128xf32>, vector<128x128xf32>, vector<8x128xf32> -> vector<8x128xf32>
    %112 = vector.extract_strided_slice %5 {offsets = [0, 11], sizes = [8, 1], strides = [1, 1]} : vector<8x16xf32> to vector<8x1xf32>
    %113 = vector.broadcast %112 : vector<8x1xf32> to vector<8x128xf32>
    %114 = arith.mulf %113, %111 : vector<8x128xf32>
    %115 = arith.addf %106, %114 : vector<8x128xf32>
    %c12_i32 = arith.constant 12 : i32
    %116 = arith.addi %6, %c12_i32 : i32
    %117 = arith.index_cast %116 : i32 to index
    %c0_42 = arith.constant 0 : index
    %c0_43 = arith.constant 0 : index
    %118 = vector.load %arg4[%117, %c0_42, %c0_43] : memref<16x128x128xf32, #tpu.memory_space<vmem>>, vector<1x128x128xf32>
    %119 = vector.shape_cast %118 : vector<1x128x128xf32> to vector<128x128xf32>
    %cst_44 = arith.constant dense<0.000000e+00> : vector<8x128xf32>
    %120 = tpu.matmul %3, %119, %cst_44 {dimension_numbers = #tpu.dot_dimension_numbers<[1], [0], [0], [1], [0, 0, 1, 1], [], []>} : vector<8x128xf32>, vector<128x128xf32>, vector<8x128xf32> -> vector<8x128xf32>
    %121 = vector.extract_strided_slice %5 {offsets = [0, 12], sizes = [8, 1], strides = [1, 1]} : vector<8x16xf32> to vector<8x1xf32>
    %122 = vector.broadcast %121 : vector<8x1xf32> to vector<8x128xf32>
    %123 = arith.mulf %122, %120 : vector<8x128xf32>
    %124 = arith.addf %115, %123 : vector<8x128xf32>
    %c13_i32 = arith.constant 13 : i32
    %125 = arith.addi %6, %c13_i32 : i32
    %126 = arith.index_cast %125 : i32 to index
    %c0_45 = arith.constant 0 : index
    %c0_46 = arith.constant 0 : index
    %127 = vector.load %arg4[%126, %c0_45, %c0_46] : memref<16x128x128xf32, #tpu.memory_space<vmem>>, vector<1x128x128xf32>
    %128 = vector.shape_cast %127 : vector<1x128x128xf32> to vector<128x128xf32>
    %cst_47 = arith.constant dense<0.000000e+00> : vector<8x128xf32>
    %129 = tpu.matmul %3, %128, %cst_47 {dimension_numbers = #tpu.dot_dimension_numbers<[1], [0], [0], [1], [0, 0, 1, 1], [], []>} : vector<8x128xf32>, vector<128x128xf32>, vector<8x128xf32> -> vector<8x128xf32>
    %130 = vector.extract_strided_slice %5 {offsets = [0, 13], sizes = [8, 1], strides = [1, 1]} : vector<8x16xf32> to vector<8x1xf32>
    %131 = vector.broadcast %130 : vector<8x1xf32> to vector<8x128xf32>
    %132 = arith.mulf %131, %129 : vector<8x128xf32>
    %133 = arith.addf %124, %132 : vector<8x128xf32>
    %c14_i32 = arith.constant 14 : i32
    %134 = arith.addi %6, %c14_i32 : i32
    %135 = arith.index_cast %134 : i32 to index
    %c0_48 = arith.constant 0 : index
    %c0_49 = arith.constant 0 : index
    %136 = vector.load %arg4[%135, %c0_48, %c0_49] : memref<16x128x128xf32, #tpu.memory_space<vmem>>, vector<1x128x128xf32>
    %137 = vector.shape_cast %136 : vector<1x128x128xf32> to vector<128x128xf32>
    %cst_50 = arith.constant dense<0.000000e+00> : vector<8x128xf32>
    %138 = tpu.matmul %3, %137, %cst_50 {dimension_numbers = #tpu.dot_dimension_numbers<[1], [0], [0], [1], [0, 0, 1, 1], [], []>} : vector<8x128xf32>, vector<128x128xf32>, vector<8x128xf32> -> vector<8x128xf32>
    %139 = vector.extract_strided_slice %5 {offsets = [0, 14], sizes = [8, 1], strides = [1, 1]} : vector<8x16xf32> to vector<8x1xf32>
    %140 = vector.broadcast %139 : vector<8x1xf32> to vector<8x128xf32>
    %141 = arith.mulf %140, %138 : vector<8x128xf32>
    %142 = arith.addf %133, %141 : vector<8x128xf32>
    %c15_i32 = arith.constant 15 : i32
    %143 = arith.addi %6, %c15_i32 : i32
    %144 = arith.index_cast %143 : i32 to index
    %c0_51 = arith.constant 0 : index
    %c0_52 = arith.constant 0 : index
    %145 = vector.load %arg4[%144, %c0_51, %c0_52] : memref<16x128x128xf32, #tpu.memory_space<vmem>>, vector<1x128x128xf32>
    %146 = vector.shape_cast %145 : vector<1x128x128xf32> to vector<128x128xf32>
    %cst_53 = arith.constant dense<0.000000e+00> : vector<8x128xf32>
    %147 = tpu.matmul %3, %146, %cst_53 {dimension_numbers = #tpu.dot_dimension_numbers<[1], [0], [0], [1], [0, 0, 1, 1], [], []>} : vector<8x128xf32>, vector<128x128xf32>, vector<8x128xf32> -> vector<8x128xf32>
    %148 = vector.extract_strided_slice %5 {offsets = [0, 15], sizes = [8, 1], strides = [1, 1]} : vector<8x16xf32> to vector<8x1xf32>
    %149 = vector.broadcast %148 : vector<8x1xf32> to vector<8x128xf32>
    %150 = arith.mulf %149, %147 : vector<8x128xf32>
    %151 = arith.addf %142, %150 : vector<8x128xf32>
    %c0_54 = arith.constant 0 : index
    %c0_55 = arith.constant 0 : index
    %152 = vector.load %arg6[%c0_54, %c0_55] : memref<8x128xf32, #tpu.memory_space<vmem>>, vector<8x128xf32>
    %153 = arith.addf %152, %151 : vector<8x128xf32>
    %c0_56 = arith.constant 0 : index
    %c0_57 = arith.constant 0 : index
    %154 = vector.load %arg6[%c0_56, %c0_57] : memref<8x128xf32, #tpu.memory_space<vmem>>, vector<8x128xf32>
    tpu.vector_store %arg6[%c0_56, %c0_57], %153 {strides = array<i32>} : memref<8x128xf32, #tpu.memory_space<vmem>>, vector<8x128xf32>,
    %c0_i32_58 = arith.constant 0 : i32
    %155 = arith.cmpi eq, %arg1, %c0_i32_58 : i32
    %156 = arith.extui %155 : i1 to i32
    %c0_i32_59 = arith.constant 0 : i32
    %157 = arith.cmpi ne, %156, %c0_i32_59 : i32
    scf.if %157 {
      %c0_60 = arith.constant 0 : index
      %c0_61 = arith.constant 0 : index
      %158 = vector.load %arg6[%c0_60, %c0_61] : memref<8x128xf32, #tpu.memory_space<vmem>>, vector<8x128xf32>
      %c0_62 = arith.constant 0 : index
      %c0_63 = arith.constant 0 : index
      %159 = vector.load %arg5[%c0_62, %c0_63] : memref<8x128xf32, #tpu.memory_space<vmem>>, vector<8x128xf32>
      tpu.vector_store %arg5[%c0_62, %c0_63], %158 {strides = array<i32>} : memref<8x128xf32, #tpu.memory_space<vmem>>, vector<8x128xf32>,
    } else {
    }
    return
  }
  func.func @transform_0(%arg0: i32, %arg1: i32) -> (i32, i32) {
    %c0_i32 = arith.constant 0 : i32
    %c0_i32_0 = arith.constant 0 : i32
    return %arg0, %c0_i32 : i32, i32
  }
  func.func @transform_1(%arg0: i32, %arg1: i32) -> (i32, i32, i32) {
    %c0_i32 = arith.constant 0 : i32
    %c0_i32_0 = arith.constant 0 : i32
    return %arg1, %arg0, %c0_i32 : i32, i32, i32
  }
  func.func @transform_2(%arg0: i32, %arg1: i32) -> (i32, i32, i32) {
    %c0_i32 = arith.constant 0 : i32
    %c0_i32_0 = arith.constant 0 : i32
    %c0_i32_1 = arith.constant 0 : i32
    %c0_i32_2 = arith.constant 0 : i32
    return %c0_i32, %c0_i32_0, %c0_i32_1 : i32, i32, i32
  }
  func.func @transform_3(%arg0: i32, %arg1: i32) -> (i32, i32) {
    %c0_i32 = arith.constant 0 : i32
    %c0_i32_0 = arith.constant 0 : i32
    return %arg0, %c0_i32 : i32, i32
  }
}

</mosaic_0001>

<llo_original>
// kernel: forward.1
$region0: #{forward.1}
  #allocation0 [shape = 'u32[]', space=smem, size = 0x4, offset = 0x4, fixed_abs, tag = 'smem constant byte address 0x4 - core index']
  #allocation1 [shape = 'u32[144,128]{1,0:T(1,128)}', space=vmem, size = 0x12000, scoped, tag = 'internal scratch']
  #allocation2 [shape = 'f32[8,128]{1,0:T(8,128)}', space=vmem, size = 0x1000, scoped, tag = 'scratch operand']
  %s0 = inlined_call_operand.vmem [shape: f32[8,128], index: 0, kind: input, shape index: {}]
  %s1 = inlined_call_operand.vmem [shape: f32[1,8,16], index: 1, kind: input, shape index: {}]
  %s2 = inlined_call_operand.hbm [shape: f32[16,128,128], index: 2, kind: input, shape index: {}]
  %s3 = inlined_call_operand.hbm [shape: f32[8,128], index: 3, kind: output, shape index: {}]
  %s4 = sld [smem:[#allocation0]]
  $region34: #{forward.1} parent=0
    _
  %s6 = ssub.s32 1, %s4
  %s7 = scalar_select 0, %s6, %s4
  $region1: #{forward.1} parent=0
    #allocation3 [shape = 'u8[1048576]{0}', space=vmem, size = 0x100000, scoped, tag = 'input window, operand 2, single buffered']
    #allocation4 [shape = 's32[1]{0}', space=sflag, size = 0x4, scoped, tag = 'scoped memory for forward.1']
    #allocation5 [shape = 's32[1]{0}', space=sflag, size = 0x4, scoped, tag = 'scoped memory for forward.1']
    #allocation6 [shape = 'u8[4096]{0}', space=vmem, size = 0x1000, scoped, tag = 'output window, operand 0, single buffered']
    %8 = vsyncpa [#allocation4], 0
    %9 = vsyncpa [#allocation5], 0
    // Predicated region
    $region2: #{forward.1} parent=1 // pred_check
      _
    $region3: #{forward.1} parent=1 // pred_check_branch
      %11 = sbr.rel (0) target = $region5
    $region4: #{forward.1} parent=1 // pred_region
      _
    $region5: #{forward.1} parent=1 // pred_fallthru
      _
    // Predicated region
    $region6: #{forward.1} parent=1 // pred_check
      _
    $region7: #{forward.1} parent=1 // pred_check_branch
      %13 = sbr.rel (0) target = $region9
    $region8: #{forward.1} parent=1 // pred_region
      _
    $region9: #{forward.1} parent=1 // pred_fallthru
      _
    // Predicated region
    $region10: #{forward.1} parent=1 // pred_check
      _
    $region11: #{forward.1} parent=1 // pred_check_branch
      %15 = sbr.rel (0) target = $region13
    $region12: #{forward.1} parent=1 // pred_region
      %s17 = ssub.s32 32768, 32768
      %18 = vsyncadd [#allocation4], %s17
      %s19 = sshll.u32 [#allocation3], 4
      %s20 = int_to_ptr.vmem [resolvable:$true] %s19
      %25 = dma.hbm_to_vmem [thread:$0]  %s2, 32768, %s20, [#allocation4], 128, 128, 8
    $region13: #{forward.1} parent=1 // pred_fallthru
      _
    // Predicated region
    $region14: #{forward.1} parent=1 // pred_check
      _
    $region15: #{forward.1} parent=1 // pred_check_branch
      %27 = sbr.rel (0) target = $region17
    $region16: #{forward.1} parent=1 // pred_region
      %28 = dma.done [#allocation4], 32768
    $region17: #{forward.1} parent=1 // pred_fallthru
      _
    %p29 = scmp.eq.s32.totalorder 0, 0
    // Predicated region
    $region18: #{forward.1} parent=1 // pred_check
      %p30 = pneg %p29
    $region19: #{forward.1} parent=1 // pred_check_branch
      %32 = sbr.rel (%p30) target = $region21
    $region20: #{forward.1} parent=1 // pred_region
      %33 = vst [vmem:[#allocation2] sm:$0xff] 0.0
    $region21: #{forward.1} parent=1 // pred_fallthru
      _
    %v34 = vld [vmem:[%s0] sm:$0xff]
    %v35 = vld [vmem:[%s1] sm:$0xff]
    %s36 = smul.u32 0, 16
    %s37 = smul.u32 %s36, 128
    %s38 = scalar_lea.vmem [#allocation3], %s37
    %v39 = vld [vmem:[%s38] sm:$0xff]
    %v40 = vld [vmem:[%s38 + $0x8] sm:$0xff]
    %v41 = vld [vmem:[%s38 + $0x10] sm:$0xff]
    %v42 = vld [vmem:[%s38 + $0x18] sm:$0xff]
    %v43 = vld [vmem:[%s38 + $0x20] sm:$0xff]
    %v44 = vld [vmem:[%s38 + $0x28] sm:$0xff]
    %v45 = vld [vmem:[%s38 + $0x30] sm:$0xff]
    %v46 = vld [vmem:[%s38 + $0x38] sm:$0xff]
    %v47 = vld [vmem:[%s38 + $0x40] sm:$0xff]
    %v48 = vld [vmem:[%s38 + $0x48] sm:$0xff]
    %v49 = vld [vmem:[%s38 + $0x50] sm:$0xff]
    %v50 = vld [vmem:[%s38 + $0x58] sm:$0xff]
    %v51 = vld [vmem:[%s38 + $0x60] sm:$0xff]
    %v52 = vld [vmem:[%s38 + $0x68] sm:$0xff]
    %v53 = vld [vmem:[%s38 + $0x70] sm:$0xff]
    %v54 = vld [vmem:[%s38 + $0x78] sm:$0xff]
    %55 = vmatprep.subr.mxu0 0.0
    %56 = vmatpush1.msra.mxu0 %v39
    %57 = vmatprep.subr.mxu0 0.0
    %58 = vmatpush1.msra.mxu0 %v40
    %59 = vmatprep.subr.mxu0 0.0
    %60 = vmatpush1.msra.mxu0 %v41
    %61 = vmatprep.subr.mxu0 0.0
    %62 = vmatpush1.msra.mxu0 %v42
    %63 = vmatprep.subr.mxu0 0.0
    %64 = vmatpush1.msra.mxu0 %v43
    %65 = vmatprep.subr.mxu0 0.0
    %66 = vmatpush1.msra.mxu0 %v44
    %67 = vmatprep.subr.mxu0 0.0
    %68 = vmatpush1.msra.mxu0 %v45
    %69 = vmatprep.subr.mxu0 0.0
    %70 = vmatpush1.msra.mxu0 %v46
    %71 = vmatprep.subr.mxu0 0.0
    %72 = vmatpush1.msra.mxu0 %v47
    %73 = vmatprep.subr.mxu0 0.0
    %74 = vmatpush1.msra.mxu0 %v48
    %75 = vmatprep.subr.mxu0 0.0
    %76 = vmatpush1.msra.mxu0 %v49
    %77 = vmatprep.subr.mxu0 0.0
    %78 = vmatpush1.msra.mxu0 %v50
    %79 = vmatprep.subr.mxu0 0.0
    %80 = vmatpush1.msra.mxu0 %v51
    %81 = vmatprep.subr.mxu0 0.0
    %82 = vmatpush1.msra.mxu0 %v52
    %83 = vmatprep.subr.mxu0 0.0
    %84 = vmatpush1.msra.mxu0 %v53
    %85 = vmatprep.subr.mxu0 0.0
    %86 = vmatpush1.msra.mxu0 %v54
    %87 = vmatprep.subr.mxu0 0.0
    %88 = vmatpush1.msra.mxu0 0.0
    %89 = vmatprep.subr.mxu0 0.0
    %90 = vmatpush1.msra.mxu0 0.0
    %91 = vmatprep.subr.mxu0 0.0
    %92 = vmatpush1.msra.mxu0 0.0
    %93 = vmatprep.subr.mxu0 0.0
    %94 = vmatpush1.msra.mxu0 0.0
    %95 = vmatprep.subr.mxu0 0.0
    %96 = vmatpush1.msra.mxu0 0.0
    %97 = vmatprep.subr.mxu0 0.0
    %98 = vmatpush1.msra.mxu0 0.0
    %99 = vmatprep.subr.mxu0 0.0
    %100 = vmatpush1.msra.mxu0 0.0
    %101 = vmatprep.subr.mxu0 0.0
    %102 = vmatpush1.msra.mxu0 0.0
    %103 = vmatprep.subr.mxu0 0.0
    %104 = vmatpush1.msra.mxu0 0.0
    %105 = vmatprep.subr.mxu0 0.0
    %106 = vmatpush1.msra.mxu0 0.0
    %107 = vmatprep.subr.mxu0 0.0
    %108 = vmatpush1.msra.mxu0 0.0
    %109 = vmatprep.subr.mxu0 0.0
    %110 = vmatpush1.msra.mxu0 0.0
    %111 = vmatprep.subr.mxu0 0.0
    %112 = vmatpush1.msra.mxu0 0.0
    %113 = vmatprep.subr.mxu0 0.0
    %114 = vmatpush1.msra.mxu0 0.0
    %115 = vmatprep.subr.mxu0 0.0
    %116 = vmatpush1.msra.mxu0 0.0
    %117 = vmatprep.subr.mxu0 0.0
    %118 = vmatpush1.msra.mxu0 0.0
    %119 = vmatprep.mubr.f32.mxu0 0.0
    %120 = vmatmul.mubr.f32.gmra.mrb[0].mxu0 %v34
    %v121 = vpop.f32.mrb[0].mxu0
    %v122 = vadd.f32 0.0, %v121
    %v123 = vpop.f32.mrb[0].mxu0
    %124 = vdwg.mxu0
    %126 = vset.pattern.permute.xlu0 0
    %127 = vperm.xlu0 %126, %v35
    %v128 = vpop.permute.xlu0 %127
    %v130 = vmul.f32 %v128, %v122
    %v131 = vadd.f32 %v130, 0.0
    %s132 = sadd.s32 %s36, 1
    %s133 = smul.u32 %s132, 128
    %s134 = scalar_lea.vmem [#allocation3], %s133
    %v135 = vld [vmem:[%s134] sm:$0xff]
    %v136 = vld [vmem:[%s134 + $0x8] sm:$0xff]
    %v137 = vld [vmem:[%s134 + $0x10] sm:$0xff]
    %v138 = vld [vmem:[%s134 + $0x18] sm:$0xff]
    %v139 = vld [vmem:[%s134 + $0x20] sm:$0xff]
    %v140 = vld [vmem:[%s134 + $0x28] sm:$0xff]
    %v141 = vld [vmem:[%s134 + $0x30] sm:$0xff]
    %v142 = vld [vmem:[%s134 + $0x38] sm:$0xff]
    %v143 = vld [vmem:[%s134 + $0x40] sm:$0xff]
    %v144 = vld [vmem:[%s134 + $0x48] sm:$0xff]
    %v145 = vld [vmem:[%s134 + $0x50] sm:$0xff]
    %v146 = vld [vmem:[%s134 + $0x58] sm:$0xff]
    %v147 = vld [vmem:[%s134 + $0x60] sm:$0xff]
    %v148 = vld [vmem:[%s134 + $0x68] sm:$0xff]
    %v149 = vld [vmem:[%s134 + $0x70] sm:$0xff]
    %v150 = vld [vmem:[%s134 + $0x78] sm:$0xff]
    %151 = vmatprep.subr.mxu0 0.0
    %152 = vmatpush1.msra.mxu0 %v135
    %153 = vmatprep.subr.mxu0 0.0
    %154 = vmatpush1.msra.mxu0 %v136
    %155 = vmatprep.subr.mxu0 0.0
    %156 = vmatpush1.msra.mxu0 %v137
    %157 = vmatprep.subr.mxu0 0.0
    %158 = vmatpush1.msra.mxu0 %v138
    %159 = vmatprep.subr.mxu0 0.0
    %160 = vmatpush1.msra.mxu0 %v139
    %161 = vmatprep.subr.mxu0 0.0
    %162 = vmatpush1.msra.mxu0 %v140
    %163 = vmatprep.subr.mxu0 0.0
    %164 = vmatpush1.msra.mxu0 %v141
    %165 = vmatprep.subr.mxu0 0.0
    %166 = vmatpush1.msra.mxu0 %v142
    %167 = vmatprep.subr.mxu0 0.0
    %168 = vmatpush1.msra.mxu0 %v143
    %169 = vmatprep.subr.mxu0 0.0
    %170 = vmatpush1.msra.mxu0 %v144
    %171 = vmatprep.subr.mxu0 0.0
    %172 = vmatpush1.msra.mxu0 %v145
    %173 = vmatprep.subr.mxu0 0.0
    %174 = vmatpush1.msra.mxu0 %v146
    %175 = vmatprep.subr.mxu0 0.0
    %176 = vmatpush1.msra.mxu0 %v147
    %177 = vmatprep.subr.mxu0 0.0
    %178 = vmatpush1.msra.mxu0 %v148
    %179 = vmatprep.subr.mxu0 0.0
    %180 = vmatpush1.msra.mxu0 %v149
    %181 = vmatprep.subr.mxu0 0.0
    %182 = vmatpush1.msra.mxu0 %v150
    %183 = vmatprep.subr.mxu0 0.0
    %184 = vmatpush1.msra.mxu0 0.0
    %185 = vmatprep.subr.mxu0 0.0
    %186 = vmatpush1.msra.mxu0 0.0
    %187 = vmatprep.subr.mxu0 0.0
    %188 = vmatpush1.msra.mxu0 0.0
    %189 = vmatprep.subr.mxu0 0.0
    %190 = vmatpush1.msra.mxu0 0.0
    %191 = vmatprep.subr.mxu0 0.0
    %192 = vmatpush1.msra.mxu0 0.0
    %193 = vmatprep.subr.mxu0 0.0
    %194 = vmatpush1.msra.mxu0 0.0
    %195 = vmatprep.subr.mxu0 0.0
    %196 = vmatpush1.msra.mxu0 0.0
    %197 = vmatprep.subr.mxu0 0.0
    %198 = vmatpush1.msra.mxu0 0.0
    %199 = vmatprep.subr.mxu0 0.0
    %200 = vmatpush1.msra.mxu0 0.0
    %201 = vmatprep.subr.mxu0 0.0
    %202 = vmatpush1.msra.mxu0 0.0
    %203 = vmatprep.subr.mxu0 0.0
    %204 = vmatpush1.msra.mxu0 0.0
    %205 = vmatprep.subr.mxu0 0.0
    %206 = vmatpush1.msra.mxu0 0.0
    %207 = vmatprep.subr.mxu0 0.0
    %208 = vmatpush1.msra.mxu0 0.0
    %209 = vmatprep.subr.mxu0 0.0
    %210 = vmatpush1.msra.mxu0 0.0
    %211 = vmatprep.subr.mxu0 0.0
    %212 = vmatpush1.msra.mxu0 0.0
    %213 = vmatprep.subr.mxu0 0.0
    %214 = vmatpush1.msra.mxu0 0.0
    %215 = vmatprep.mubr.f32.mxu0 0.0
    %216 = vmatmul.mubr.f32.gmra.mrb[0].mxu0 %v34
    %v217 = vpop.f32.mrb[0].mxu0
    %v218 = vadd.f32 0.0, %v217
    %v219 = vpop.f32.mrb[0].mxu0
    %220 = vdwg.mxu0
    %221 = vset.pattern.permute.xlu0 1
    %222 = vperm.xlu0 %221, %v35
    %v223 = vpop.permute.xlu0 %222
    %v225 = vmul.f32 %v223, %v218
    %v226 = vadd.f32 %v131, %v225
    %s227 = sadd.s32 %s36, 2
    %s228 = smul.u32 %s227, 128
    %s229 = scalar_lea.vmem [#allocation3], %s228
    %v230 = vld [vmem:[%s229] sm:$0xff]
    %v231 = vld [vmem:[%s229 + $0x8] sm:$0xff]
    %v232 = vld [vmem:[%s229 + $0x10] sm:$0xff]
    %v233 = vld [vmem:[%s229 + $0x18] sm:$0xff]
    %v234 = vld [vmem:[%s229 + $0x20] sm:$0xff]
    %v235 = vld [vmem:[%s229 + $0x28] sm:$0xff]
    %v236 = vld [vmem:[%s229 + $0x30] sm:$0xff]
    %v237 = vld [vmem:[%s229 + $0x38] sm:$0xff]
    %v238 = vld [vmem:[%s229 + $0x40] sm:$0xff]
    %v239 = vld [vmem:[%s229 + $0x48] sm:$0xff]
    %v240 = vld [vmem:[%s229 + $0x50] sm:$0xff]
    %v241 = vld [vmem:[%s229 + $0x58] sm:$0xff]
    %v242 = vld [vmem:[%s229 + $0x60] sm:$0xff]
    %v243 = vld [vmem:[%s229 + $0x68] sm:$0xff]
    %v244 = vld [vmem:[%s229 + $0x70] sm:$0xff]
    %v245 = vld [vmem:[%s229 + $0x78] sm:$0xff]
    %246 = vmatprep.subr.mxu0 0.0
    %247 = vmatpush1.msra.mxu0 %v230
    %248 = vmatprep.subr.mxu0 0.0
    %249 = vmatpush1.msra.mxu0 %v231
    %250 = vmatprep.subr.mxu0 0.0
    %251 = vmatpush1.msra.mxu0 %v232
    %252 = vmatprep.subr.mxu0 0.0
    %253 = vmatpush1.msra.mxu0 %v233
    %254 = vmatprep.subr.mxu0 0.0
    %255 = vmatpush1.msra.mxu0 %v234
    %256 = vmatprep.subr.mxu0 0.0
    %257 = vmatpush1.msra.mxu0 %v235
    %258 = vmatprep.subr.mxu0 0.0
    %259 = vmatpush1.msra.mxu0 %v236
    %260 = vmatprep.subr.mxu0 0.0
    %261 = vmatpush1.msra.mxu0 %v237
    %262 = vmatprep.subr.mxu0 0.0
    %263 = vmatpush1.msra.mxu0 %v238
    %264 = vmatprep.subr.mxu0 0.0
    %265 = vmatpush1.msra.mxu0 %v239
    %266 = vmatprep.subr.mxu0 0.0
    %267 = vmatpush1.msra.mxu0 %v240
    %268 = vmatprep.subr.mxu0 0.0
    %269 = vmatpush1.msra.mxu0 %v241
    %270 = vmatprep.subr.mxu0 0.0
    %271 = vmatpush1.msra.mxu0 %v242
    %272 = vmatprep.subr.mxu0 0.0
    %273 = vmatpush1.msra.mxu0 %v243
    %274 = vmatprep.subr.mxu0 0.0
    %275 = vmatpush1.msra.mxu0 %v244
    %276 = vmatprep.subr.mxu0 0.0
    %277 = vmatpush1.msra.mxu0 %v245
    %278 = vmatprep.subr.mxu0 0.0
    %279 = vmatpush1.msra.mxu0 0.0
    %280 = vmatprep.subr.mxu0 0.0
    %281 = vmatpush1.msra.mxu0 0.0
    %282 = vmatprep.subr.mxu0 0.0
    %283 = vmatpush1.msra.mxu0 0.0
    %284 = vmatprep.subr.mxu0 0.0
    %285 = vmatpush1.msra.mxu0 0.0
    %286 = vmatprep.subr.mxu0 0.0
    %287 = vmatpush1.msra.mxu0 0.0
    %288 = vmatprep.subr.mxu0 0.0
    %289 = vmatpush1.msra.mxu0 0.0
    %290 = vmatprep.subr.mxu0 0.0
    %291 = vmatpush1.msra.mxu0 0.0
    %292 = vmatprep.subr.mxu0 0.0
    %293 = vmatpush1.msra.mxu0 0.0
    %294 = vmatprep.subr.mxu0 0.0
    %295 = vmatpush1.msra.mxu0 0.0
    %296 = vmatprep.subr.mxu0 0.0
    %297 = vmatpush1.msra.mxu0 0.0
    %298 = vmatprep.subr.mxu0 0.0
    %299 = vmatpush1.msra.mxu0 0.0
    %300 = vmatprep.subr.mxu0 0.0
    %301 = vmatpush1.msra.mxu0 0.0
    %302 = vmatprep.subr.mxu0 0.0
    %303 = vmatpush1.msra.mxu0 0.0
    %304 = vmatprep.subr.mxu0 0.0
    %305 = vmatpush1.msra.mxu0 0.0
    %306 = vmatprep.subr.mxu0 0.0
    %307 = vmatpush1.msra.mxu0 0.0
    %308 = vmatprep.subr.mxu0 0.0
    %309 = vmatpush1.msra.mxu0 0.0
    %310 = vmatprep.mubr.f32.mxu0 0.0
    %311 = vmatmul.mubr.f32.gmra.mrb[0].mxu0 %v34
    %v312 = vpop.f32.mrb[0].mxu0
    %v313 = vadd.f32 0.0, %v312
    %v314 = vpop.f32.mrb[0].mxu0
    %315 = vdwg.mxu0
    %316 = vset.pattern.permute.xlu0 2
    %317 = vperm.xlu0 %316, %v35
    %v318 = vpop.permute.xlu0 %317
    %v320 = vmul.f32 %v318, %v313
    %v321 = vadd.f32 %v226, %v320
    %s322 = sadd.s32 %s36, 3
    %s323 = smul.u32 %s322, 128
    %s324 = scalar_lea.vmem [#allocation3], %s323
    %v325 = vld [vmem:[%s324] sm:$0xff]
    %v326 = vld [vmem:[%s324 + $0x8] sm:$0xff]
    %v327 = vld [vmem:[%s324 + $0x10] sm:$0xff]
    %v328 = vld [vmem:[%s324 + $0x18] sm:$0xff]
    %v329 = vld [vmem:[%s324 + $0x20] sm:$0xff]
    %v330 = vld [vmem:[%s324 + $0x28] sm:$0xff]
    %v331 = vld [vmem:[%s324 + $0x30] sm:$0xff]
    %v332 = vld [vmem:[%s324 + $0x38] sm:$0xff]
    %v333 = vld [vmem:[%s324 + $0x40] sm:$0xff]
    %v334 = vld [vmem:[%s324 + $0x48] sm:$0xff]
    %v335 = vld [vmem:[%s324 + $0x50] sm:$0xff]
    %v336 = vld [vmem:[%s324 + $0x58] sm:$0xff]
    %v337 = vld [vmem:[%s324 + $0x60] sm:$0xff]
    %v338 = vld [vmem:[%s324 + $0x68] sm:$0xff]
    %v339 = vld [vmem:[%s324 + $0x70] sm:$0xff]
    %v340 = vld [vmem:[%s324 + $0x78] sm:$0xff]
    %341 = vmatprep.subr.mxu0 0.0
    %342 = vmatpush1.msra.mxu0 %v325
    %343 = vmatprep.subr.mxu0 0.0
    %344 = vmatpush1.msra.mxu0 %v326
    %345 = vmatprep.subr.mxu0 0.0
    %346 = vmatpush1.msra.mxu0 %v327
    %347 = vmatprep.subr.mxu0 0.0
    %348 = vmatpush1.msra.mxu0 %v328
    %349 = vmatprep.subr.mxu0 0.0
    %350 = vmatpush1.msra.mxu0 %v329
    %351 = vmatprep.subr.mxu0 0.0
    %352 = vmatpush1.msra.mxu0 %v330
    %353 = vmatprep.subr.mxu0 0.0
    %354 = vmatpush1.msra.mxu0 %v331
    %355 = vmatprep.subr.mxu0 0.0
    %356 = vmatpush1.msra.mxu0 %v332
    %357 = vmatprep.subr.mxu0 0.0
    %358 = vmatpush1.msra.mxu0 %v333
    %359 = vmatprep.subr.mxu0 0.0
    %360 = vmatpush1.msra.mxu0 %v334
    %361 = vmatprep.subr.mxu0 0.0
    %362 = vmatpush1.msra.mxu0 %v335
    %363 = vmatprep.subr.mxu0 0.0
    %364 = vmatpush1.msra.mxu0 %v336
    %365 = vmatprep.subr.mxu0 0.0
    %366 = vmatpush1.msra.mxu0 %v337
    %367 = vmatprep.subr.mxu0 0.0
    %368 = vmatpush1.msra.mxu0 %v338
    %369 = vmatprep.subr.mxu0 0.0
    %370 = vmatpush1.msra.mxu0 %v339
    %371 = vmatprep.subr.mxu0 0.0
    %372 = vmatpush1.msra.mxu0 %v340
    %373 = vmatprep.subr.mxu0 0.0
    %374 = vmatpush1.msra.mxu0 0.0
    %375 = vmatprep.subr.mxu0 0.0
    %376 = vmatpush1.msra.mxu0 0.0
    %377 = vmatprep.subr.mxu0 0.0
    %378 = vmatpush1.msra.mxu0 0.0
    %379 = vmatprep.subr.mxu0 0.0
    %380 = vmatpush1.msra.mxu0 0.0
    %381 = vmatprep.subr.mxu0 0.0
    %382 = vmatpush1.msra.mxu0 0.0
    %383 = vmatprep.subr.mxu0 0.0
    %384 = vmatpush1.msra.mxu0 0.0
    %385 = vmatprep.subr.mxu0 0.0
    %386 = vmatpush1.msra.mxu0 0.0
    %387 = vmatprep.subr.mxu0 0.0
    %388 = vmatpush1.msra.mxu0 0.0
    %389 = vmatprep.subr.mxu0 0.0
    %390 = vmatpush1.msra.mxu0 0.0
    %391 = vmatprep.subr.mxu0 0.0
    %392 = vmatpush1.msra.mxu0 0.0
    %393 = vmatprep.subr.mxu0 0.0
    %394 = vmatpush1.msra.mxu0 0.0
    %395 = vmatprep.subr.mxu0 0.0
    %396 = vmatpush1.msra.mxu0 0.0
    %397 = vmatprep.subr.mxu0 0.0
    %398 = vmatpush1.msra.mxu0 0.0
    %399 = vmatprep.subr.mxu0 0.0
    %400 = vmatpush1.msra.mxu0 0.0
    %401 = vmatprep.subr.mxu0 0.0
    %402 = vmatpush1.msra.mxu0 0.0
    %403 = vmatprep.subr.mxu0 0.0
    %404 = vmatpush1.msra.mxu0 0.0
    %405 = vmatprep.mubr.f32.mxu0 0.0
    %406 = vmatmul.mubr.f32.gmra.mrb[0].mxu0 %v34
    %v407 = vpop.f32.mrb[0].mxu0
    %v408 = vadd.f32 0.0, %v407
    %v409 = vpop.f32.mrb[0].mxu0
    %410 = vdwg.mxu0
    %411 = vset.pattern.permute.xlu0 3
    %412 = vperm.xlu0 %411, %v35
    %v413 = vpop.permute.xlu0 %412
    %v415 = vmul.f32 %v413, %v408
    %v416 = vadd.f32 %v321, %v415
    %s417 = sadd.s32 %s36, 4
    %s418 = smul.u32 %s417, 128
    %s419 = scalar_lea.vmem [#allocation3], %s418
    %v420 = vld [vmem:[%s419] sm:$0xff]
    %v421 = vld [vmem:[%s419 + $0x8] sm:$0xff]
    %v422 = vld [vmem:[%s419 + $0x10] sm:$0xff]
    %v423 = vld [vmem:[%s419 + $0x18] sm:$0xff]
    %v424 = vld [vmem:[%s419 + $0x20] sm:$0xff]
    %v425 = vld [vmem:[%s419 + $0x28] sm:$0xff]
    %v426 = vld [vmem:[%s419 + $0x30] sm:$0xff]
    %v427 = vld [vmem:[%s419 + $0x38] sm:$0xff]
    %v428 = vld [vmem:[%s419 + $0x40] sm:$0xff]
    %v429 = vld [vmem:[%s419 + $0x48] sm:$0xff]
    %v430 = vld [vmem:[%s419 + $0x50] sm:$0xff]
    %v431 = vld [vmem:[%s419 + $0x58] sm:$0xff]
    %v432 = vld [vmem:[%s419 + $0x60] sm:$0xff]
    %v433 = vld [vmem:[%s419 + $0x68] sm:$0xff]
    %v434 = vld [vmem:[%s419 + $0x70] sm:$0xff]
    %v435 = vld [vmem:[%s419 + $0x78] sm:$0xff]
    %436 = vmatprep.subr.mxu0 0.0
    %437 = vmatpush1.msra.mxu0 %v420
    %438 = vmatprep.subr.mxu0 0.0
    %439 = vmatpush1.msra.mxu0 %v421
    %440 = vmatprep.subr.mxu0 0.0
    %441 = vmatpush1.msra.mxu0 %v422
    %442 = vmatprep.subr.mxu0 0.0
    %443 = vmatpush1.msra.mxu0 %v423
    %444 = vmatprep.subr.mxu0 0.0
    %445 = vmatpush1.msra.mxu0 %v424
    %446 = vmatprep.subr.mxu0 0.0
    %447 = vmatpush1.msra.mxu0 %v425
    %448 = vmatprep.subr.mxu0 0.0
    %449 = vmatpush1.msra.mxu0 %v426
    %450 = vmatprep.subr.mxu0 0.0
    %451 = vmatpush1.msra.mxu0 %v427
    %452 = vmatprep.subr.mxu0 0.0
    %453 = vmatpush1.msra.mxu0 %v428
    %454 = vmatprep.subr.mxu0 0.0
    %455 = vmatpush1.msra.mxu0 %v429
    %456 = vmatprep.subr.mxu0 0.0
    %457 = vmatpush1.msra.mxu0 %v430
    %458 = vmatprep.subr.mxu0 0.0
    %459 = vmatpush1.msra.mxu0 %v431
    %460 = vmatprep.subr.mxu0 0.0
    %461 = vmatpush1.msra.mxu0 %v432
    %462 = vmatprep.subr.mxu0 0.0
    %463 = vmatpush1.msra.mxu0 %v433
    %464 = vmatprep.subr.mxu0 0.0
    %465 = vmatpush1.msra.mxu0 %v434
    %466 = vmatprep.subr.mxu0 0.0
    %467 = vmatpush1.msra.mxu0 %v435
    %468 = vmatprep.subr.mxu0 0.0
    %469 = vmatpush1.msra.mxu0 0.0
    %470 = vmatprep.subr.mxu0 0.0
    %471 = vmatpush1.msra.mxu0 0.0
    %472 = vmatprep.subr.mxu0 0.0
    %473 = vmatpush1.msra.mxu0 0.0
    %474 = vmatprep.subr.mxu0 0.0
    %475 = vmatpush1.msra.mxu0 0.0
    %476 = vmatprep.subr.mxu0 0.0
    %477 = vmatpush1.msra.mxu0 0.0
    %478 = vmatprep.subr.mxu0 0.0
    %479 = vmatpush1.msra.mxu0 0.0
    %480 = vmatprep.subr.mxu0 0.0
    %481 = vmatpush1.msra.mxu0 0.0
    %482 = vmatprep.subr.mxu0 0.0
    %483 = vmatpush1.msra.mxu0 0.0
    %484 = vmatprep.subr.mxu0 0.0
    %485 = vmatpush1.msra.mxu0 0.0
    %486 = vmatprep.subr.mxu0 0.0
    %487 = vmatpush1.msra.mxu0 0.0
    %488 = vmatprep.subr.mxu0 0.0
    %489 = vmatpush1.msra.mxu0 0.0
    %490 = vmatprep.subr.mxu0 0.0
    %491 = vmatpush1.msra.mxu0 0.0
    %492 = vmatprep.subr.mxu0 0.0
    %493 = vmatpush1.msra.mxu0 0.0
    %494 = vmatprep.subr.mxu0 0.0
    %495 = vmatpush1.msra.mxu0 0.0
    %496 = vmatprep.subr.mxu0 0.0
    %497 = vmatpush1.msra.mxu0 0.0
    %498 = vmatprep.subr.mxu0 0.0
    %499 = vmatpush1.msra.mxu0 0.0
    %500 = vmatprep.mubr.f32.mxu0 0.0
    %501 = vmatmul.mubr.f32.gmra.mrb[0].mxu0 %v34
    %v502 = vpop.f32.mrb[0].mxu0
    %v503 = vadd.f32 0.0, %v502
    %v504 = vpop.f32.mrb[0].mxu0
    %505 = vdwg.mxu0
    %506 = vset.pattern.permute.xlu0 4
    %507 = vperm.xlu0 %506, %v35
    %v508 = vpop.permute.xlu0 %507
    %v510 = vmul.f32 %v508, %v503
    %v511 = vadd.f32 %v416, %v510
    %s512 = sadd.s32 %s36, 5
    %s513 = smul.u32 %s512, 128
    %s514 = scalar_lea.vmem [#allocation3], %s513
    %v515 = vld [vmem:[%s514] sm:$0xff]
    %v516 = vld [vmem:[%s514 + $0x8] sm:$0xff]
    %v517 = vld [vmem:[%s514 + $0x10] sm:$0xff]
    %v518 = vld [vmem:[%s514 + $0x18] sm:$0xff]
    %v519 = vld [vmem:[%s514 + $0x20] sm:$0xff]
    %v520 = vld [vmem:[%s514 + $0x28] sm:$0xff]
    %v521 = vld [vmem:[%s514 + $0x30] sm:$0xff]
    %v522 = vld [vmem:[%s514 + $0x38] sm:$0xff]
    %v523 = vld [vmem:[%s514 + $0x40] sm:$0xff]
    %v524 = vld [vmem:[%s514 + $0x48] sm:$0xff]
    %v525 = vld [vmem:[%s514 + $0x50] sm:$0xff]
    %v526 = vld [vmem:[%s514 + $0x58] sm:$0xff]
    %v527 = vld [vmem:[%s514 + $0x60] sm:$0xff]
    %v528 = vld [vmem:[%s514 + $0x68] sm:$0xff]
    %v529 = vld [vmem:[%s514 + $0x70] sm:$0xff]
    %v530 = vld [vmem:[%s514 + $0x78] sm:$0xff]
    %531 = vmatprep.subr.mxu0 0.0
    %532 = vmatpush1.msra.mxu0 %v515
    %533 = vmatprep.subr.mxu0 0.0
    %534 = vmatpush1.msra.mxu0 %v516
    %535 = vmatprep.subr.mxu0 0.0
    %536 = vmatpush1.msra.mxu0 %v517
    %537 = vmatprep.subr.mxu0 0.0
    %538 = vmatpush1.msra.mxu0 %v518
    %539 = vmatprep.subr.mxu0 0.0
    %540 = vmatpush1.msra.mxu0 %v519
    %541 = vmatprep.subr.mxu0 0.0
    %542 = vmatpush1.msra.mxu0 %v520
    %543 = vmatprep.subr.mxu0 0.0
    %544 = vmatpush1.msra.mxu0 %v521
    %545 = vmatprep.subr.mxu0 0.0
    %546 = vmatpush1.msra.mxu0 %v522
    %547 = vmatprep.subr.mxu0 0.0
    %548 = vmatpush1.msra.mxu0 %v523
    %549 = vmatprep.subr.mxu0 0.0
    %550 = vmatpush1.msra.mxu0 %v524
    %551 = vmatprep.subr.mxu0 0.0
    %552 = vmatpush1.msra.mxu0 %v525
    %553 = vmatprep.subr.mxu0 0.0
    %554 = vmatpush1.msra.mxu0 %v526
    %555 = vmatprep.subr.mxu0 0.0
    %556 = vmatpush1.msra.mxu0 %v527
    %557 = vmatprep.subr.mxu0 0.0
    %558 = vmatpush1.msra.mxu0 %v528
    %559 = vmatprep.subr.mxu0 0.0
    %560 = vmatpush1.msra.mxu0 %v529
    %561 = vmatprep.subr.mxu0 0.0
    %562 = vmatpush1.msra.mxu0 %v530
    %563 = vmatprep.subr.mxu0 0.0
    %564 = vmatpush1.msra.mxu0 0.0
    %565 = vmatprep.subr.mxu0 0.0
    %566 = vmatpush1.msra.mxu0 0.0
    %567 = vmatprep.subr.mxu0 0.0
    %568 = vmatpush1.msra.mxu0 0.0
    %569 = vmatprep.subr.mxu0 0.0
    %570 = vmatpush1.msra.mxu0 0.0
    %571 = vmatprep.subr.mxu0 0.0
    %572 = vmatpush1.msra.mxu0 0.0
    %573 = vmatprep.subr.mxu0 0.0
    %574 = vmatpush1.msra.mxu0 0.0
    %575 = vmatprep.subr.mxu0 0.0
    %576 = vmatpush1.msra.mxu0 0.0
    %577 = vmatprep.subr.mxu0 0.0
    %578 = vmatpush1.msra.mxu0 0.0
    %579 = vmatprep.subr.mxu0 0.0
    %580 = vmatpush1.msra.mxu0 0.0
    %581 = vmatprep.subr.mxu0 0.0
    %582 = vmatpush1.msra.mxu0 0.0
    %583 = vmatprep.subr.mxu0 0.0
    %584 = vmatpush1.msra.mxu0 0.0
    %585 = vmatprep.subr.mxu0 0.0
    %586 = vmatpush1.msra.mxu0 0.0
    %587 = vmatprep.subr.mxu0 0.0
    %588 = vmatpush1.msra.mxu0 0.0
    %589 = vmatprep.subr.mxu0 0.0
    %590 = vmatpush1.msra.mxu0 0.0
    %591 = vmatprep.subr.mxu0 0.0
    %592 = vmatpush1.msra.mxu0 0.0
    %593 = vmatprep.subr.mxu0 0.0
    %594 = vmatpush1.msra.mxu0 0.0
    %595 = vmatprep.mubr.f32.mxu0 0.0
    %596 = vmatmul.mubr.f32.gmra.mrb[0].mxu0 %v34
    %v597 = vpop.f32.mrb[0].mxu0
    %v598 = vadd.f32 0.0, %v597
    %v599 = vpop.f32.mrb[0].mxu0
    %600 = vdwg.mxu0
    %601 = vset.pattern.permute.xlu0 5
    %602 = vperm.xlu0 %601, %v35
    %v603 = vpop.permute.xlu0 %602
    %v605 = vmul.f32 %v603, %v598
    %v606 = vadd.f32 %v511, %v605
    %s607 = sadd.s32 %s36, 6
    %s608 = smul.u32 %s607, 128
    %s609 = scalar_lea.vmem [#allocation3], %s608
    %v610 = vld [vmem:[%s609] sm:$0xff]
    %v611 = vld [vmem:[%s609 + $0x8] sm:$0xff]
    %v612 = vld [vmem:[%s609 + $0x10] sm:$0xff]
    %v613 = vld [vmem:[%s609 + $0x18] sm:$0xff]
    %v614 = vld [vmem:[%s609 + $0x20] sm:$0xff]
    %v615 = vld [vmem:[%s609 + $0x28] sm:$0xff]
    %v616 = vld [vmem:[%s609 + $0x30] sm:$0xff]
    %v617 = vld [vmem:[%s609 + $0x38] sm:$0xff]
    %v618 = vld [vmem:[%s609 + $0x40] sm:$0xff]
    %v619 = vld [vmem:[%s609 + $0x48] sm:$0xff]
    %v620 = vld [vmem:[%s609 + $0x50] sm:$0xff]
    %v621 = vld [vmem:[%s609 + $0x58] sm:$0xff]
    %v622 = vld [vmem:[%s609 + $0x60] sm:$0xff]
    %v623 = vld [vmem:[%s609 + $0x68] sm:$0xff]
    %v624 = vld [vmem:[%s609 + $0x70] sm:$0xff]
    %v625 = vld [vmem:[%s609 + $0x78] sm:$0xff]
    %626 = vmatprep.subr.mxu0 0.0
    %627 = vmatpush1.msra.mxu0 %v610
    %628 = vmatprep.subr.mxu0 0.0
    %629 = vmatpush1.msra.mxu0 %v611
    %630 = vmatprep.subr.mxu0 0.0
    %631 = vmatpush1.msra.mxu0 %v612
    %632 = vmatprep.subr.mxu0 0.0
    %633 = vmatpush1.msra.mxu0 %v613
    %634 = vmatprep.subr.mxu0 0.0
    %635 = vmatpush1.msra.mxu0 %v614
    %636 = vmatprep.subr.mxu0 0.0
    %637 = vmatpush1.msra.mxu0 %v615
    %638 = vmatprep.subr.mxu0 0.0
    %639 = vmatpush1.msra.mxu0 %v616
    %640 = vmatprep.subr.mxu0 0.0
    %641 = vmatpush1.msra.mxu0 %v617
    %642 = vmatprep.subr.mxu0 0.0
    %643 = vmatpush1.msra.mxu0 %v618
    %644 = vmatprep.subr.mxu0 0.0
    %645 = vmatpush1.msra.mxu0 %v619
    %646 = vmatprep.subr.mxu0 0.0
    %647 = vmatpush1.msra.mxu0 %v620
    %648 = vmatprep.subr.mxu0 0.0
    %649 = vmatpush1.msra.mxu0 %v621
    %650 = vmatprep.subr.mxu0 0.0
    %651 = vmatpush1.msra.mxu0 %v622
    %652 = vmatprep.subr.mxu0 0.0
    %653 = vmatpush1.msra.mxu0 %v623
    %654 = vmatprep.subr.mxu0 0.0
    %655 = vmatpush1.msra.mxu0 %v624
    %656 = vmatprep.subr.mxu0 0.0
    %657 = vmatpush1.msra.mxu0 %v625
    %658 = vmatprep.subr.mxu0 0.0
    %659 = vmatpush1.msra.mxu0 0.0
    %660 = vmatprep.subr.mxu0 0.0
    %661 = vmatpush1.msra.mxu0 0.0
    %662 = vmatprep.subr.mxu0 0.0
    %663 = vmatpush1.msra.mxu0 0.0
    %664 = vmatprep.subr.mxu0 0.0
    %665 = vmatpush1.msra.mxu0 0.0
    %666 = vmatprep.subr.mxu0 0.0
    %667 = vmatpush1.msra.mxu0 0.0
    %668 = vmatprep.subr.mxu0 0.0
    %669 = vmatpush1.msra.mxu0 0.0
    %670 = vmatprep.subr.mxu0 0.0
    %671 = vmatpush1.msra.mxu0 0.0
    %672 = vmatprep.subr.mxu0 0.0
    %673 = vmatpush1.msra.mxu0 0.0
    %674 = vmatprep.subr.mxu0 0.0
    %675 = vmatpush1.msra.mxu0 0.0
    %676 = vmatprep.subr.mxu0 0.0
    %677 = vmatpush1.msra.mxu0 0.0
    %678 = vmatprep.subr.mxu0 0.0
    %679 = vmatpush1.msra.mxu0 0.0
    %680 = vmatprep.subr.mxu0 0.0
    %681 = vmatpush1.msra.mxu0 0.0
    %682 = vmatprep.subr.mxu0 0.0
    %683 = vmatpush1.msra.mxu0 0.0
    %684 = vmatprep.subr.mxu0 0.0
    %685 = vmatpush1.msra.mxu0 0.0
    %686 = vmatprep.subr.mxu0 0.0
    %687 = vmatpush1.msra.mxu0 0.0
    %688 = vmatprep.subr.mxu0 0.0
    %689 = vmatpush1.msra.mxu0 0.0
    %690 = vmatprep.mubr.f32.mxu0 0.0
    %691 = vmatmul.mubr.f32.gmra.mrb[0].mxu0 %v34
    %v692 = vpop.f32.mrb[0].mxu0
    %v693 = vadd.f32 0.0, %v692
    %v694 = vpop.f32.mrb[0].mxu0
    %695 = vdwg.mxu0
    %696 = vset.pattern.permute.xlu0 6
    %697 = vperm.xlu0 %696, %v35
    %v698 = vpop.permute.xlu0 %697
    %v700 = vmul.f32 %v698, %v693
    %v701 = vadd.f32 %v606, %v700
    %s702 = sadd.s32 %s36, 7
    %s703 = smul.u32 %s702, 128
    %s704 = scalar_lea.vmem [#allocation3], %s703
    %v705 = vld [vmem:[%s704] sm:$0xff]
    %v706 = vld [vmem:[%s704 + $0x8] sm:$0xff]
    %v707 = vld [vmem:[%s704 + $0x10] sm:$0xff]
    %v708 = vld [vmem:[%s704 + $0x18] sm:$0xff]
    %v709 = vld [vmem:[%s704 + $0x20] sm:$0xff]
    %v710 = vld [vmem:[%s704 + $0x28] sm:$0xff]
    %v711 = vld [vmem:[%s704 + $0x30] sm:$0xff]
    %v712 = vld [vmem:[%s704 + $0x38] sm:$0xff]
    %v713 = vld [vmem:[%s704 + $0x40] sm:$0xff]
    %v714 = vld [vmem:[%s704 + $0x48] sm:$0xff]
    %v715 = vld [vmem:[%s704 + $0x50] sm:$0xff]
    %v716 = vld [vmem:[%s704 + $0x58] sm:$0xff]
    %v717 = vld [vmem:[%s704 + $0x60] sm:$0xff]
    %v718 = vld [vmem:[%s704 + $0x68] sm:$0xff]
    %v719 = vld [vmem:[%s704 + $0x70] sm:$0xff]
    %v720 = vld [vmem:[%s704 + $0x78] sm:$0xff]
    %721 = vmatprep.subr.mxu0 0.0
    %722 = vmatpush1.msra.mxu0 %v705
    %723 = vmatprep.subr.mxu0 0.0
    %724 = vmatpush1.msra.mxu0 %v706
    %725 = vmatprep.subr.mxu0 0.0
    %726 = vmatpush1.msra.mxu0 %v707
    %727 = vmatprep.subr.mxu0 0.0
    %728 = vmatpush1.msra.mxu0 %v708
    %729 = vmatprep.subr.mxu0 0.0
    %730 = vmatpush1.msra.mxu0 %v709
    %731 = vmatprep.subr.mxu0 0.0
    %732 = vmatpush1.msra.mxu0 %v710
    %733 = vmatprep.subr.mxu0 0.0
    %734 = vmatpush1.msra.mxu0 %v711
    %735 = vmatprep.subr.mxu0 0.0
    %736 = vmatpush1.msra.mxu0 %v712
    %737 = vmatprep.subr.mxu0 0.0
    %738 = vmatpush1.msra.mxu0 %v713
    %739 = vmatprep.subr.mxu0 0.0
    %740 = vmatpush1.msra.mxu0 %v714
    %741 = vmatprep.subr.mxu0 0.0
    %742 = vmatpush1.msra.mxu0 %v715
    %743 = vmatprep.subr.mxu0 0.0
    %744 = vmatpush1.msra.mxu0 %v716
    %745 = vmatprep.subr.mxu0 0.0
    %746 = vmatpush1.msra.mxu0 %v717
    %747 = vmatprep.subr.mxu0 0.0
    %748 = vmatpush1.msra.mxu0 %v718
    %749 = vmatprep.subr.mxu0 0.0
    %750 = vmatpush1.msra.mxu0 %v719
    %751 = vmatprep.subr.mxu0 0.0
    %752 = vmatpush1.msra.mxu0 %v720
    %753 = vmatprep.subr.mxu0 0.0
    %754 = vmatpush1.msra.mxu0 0.0
    %755 = vmatprep.subr.mxu0 0.0
    %756 = vmatpush1.msra.mxu0 0.0
    %757 = vmatprep.subr.mxu0 0.0
    %758 = vmatpush1.msra.mxu0 0.0
    %759 = vmatprep.subr.mxu0 0.0
    %760 = vmatpush1.msra.mxu0 0.0
    %761 = vmatprep.subr.mxu0 0.0
    %762 = vmatpush1.msra.mxu0 0.0
    %763 = vmatprep.subr.mxu0 0.0
    %764 = vmatpush1.msra.mxu0 0.0
    %765 = vmatprep.subr.mxu0 0.0
    %766 = vmatpush1.msra.mxu0 0.0
    %767 = vmatprep.subr.mxu0 0.0
    %768 = vmatpush1.msra.mxu0 0.0
    %769 = vmatprep.subr.mxu0 0.0
    %770 = vmatpush1.msra.mxu0 0.0
    %771 = vmatprep.subr.mxu0 0.0
    %772 = vmatpush1.msra.mxu0 0.0
    %773 = vmatprep.subr.mxu0 0.0
    %774 = vmatpush1.msra.mxu0 0.0
    %775 = vmatprep.subr.mxu0 0.0
    %776 = vmatpush1.msra.mxu0 0.0
    %777 = vmatprep.subr.mxu0 0.0
    %778 = vmatpush1.msra.mxu0 0.0
    %779 = vmatprep.subr.mxu0 0.0
    %780 = vmatpush1.msra.mxu0 0.0
    %781 = vmatprep.subr.mxu0 0.0
    %782 = vmatpush1.msra.mxu0 0.0
    %783 = vmatprep.subr.mxu0 0.0
    %784 = vmatpush1.msra.mxu0 0.0
    %785 = vmatprep.mubr.f32.mxu0 0.0
    %786 = vmatmul.mubr.f32.gmra.mrb[0].mxu0 %v34
    %v787 = vpop.f32.mrb[0].mxu0
    %v788 = vadd.f32 0.0, %v787
    %v789 = vpop.f32.mrb[0].mxu0
    %790 = vdwg.mxu0
    %791 = vset.pattern.permute.xlu0 7
    %792 = vperm.xlu0 %791, %v35
    %v793 = vpop.permute.xlu0 %792
    %v795 = vmul.f32 %v793, %v788
    %v796 = vadd.f32 %v701, %v795
    %s797 = sadd.s32 %s36, 8
    %s798 = smul.u32 %s797, 128
    %s799 = scalar_lea.vmem [#allocation3], %s798
    %v800 = vld [vmem:[%s799] sm:$0xff]
    %v801 = vld [vmem:[%s799 + $0x8] sm:$0xff]
    %v802 = vld [vmem:[%s799 + $0x10] sm:$0xff]
    %v803 = vld [vmem:[%s799 + $0x18] sm:$0xff]
    %v804 = vld [vmem:[%s799 + $0x20] sm:$0xff]
    %v805 = vld [vmem:[%s799 + $0x28] sm:$0xff]
    %v806 = vld [vmem:[%s799 + $0x30] sm:$0xff]
    %v807 = vld [vmem:[%s799 + $0x38] sm:$0xff]
    %v808 = vld [vmem:[%s799 + $0x40] sm:$0xff]
    %v809 = vld [vmem:[%s799 + $0x48] sm:$0xff]
    %v810 = vld [vmem:[%s799 + $0x50] sm:$0xff]
    %v811 = vld [vmem:[%s799 + $0x58] sm:$0xff]
    %v812 = vld [vmem:[%s799 + $0x60] sm:$0xff]
    %v813 = vld [vmem:[%s799 + $0x68] sm:$0xff]
    %v814 = vld [vmem:[%s799 + $0x70] sm:$0xff]
    %v815 = vld [vmem:[%s799 + $0x78] sm:$0xff]
    %816 = vmatprep.subr.mxu0 0.0
    %817 = vmatpush1.msra.mxu0 %v800
    %818 = vmatprep.subr.mxu0 0.0
    %819 = vmatpush1.msra.mxu0 %v801
    %820 = vmatprep.subr.mxu0 0.0
    %821 = vmatpush1.msra.mxu0 %v802
    %822 = vmatprep.subr.mxu0 0.0
    %823 = vmatpush1.msra.mxu0 %v803
    %824 = vmatprep.subr.mxu0 0.0
    %825 = vmatpush1.msra.mxu0 %v804
    %826 = vmatprep.subr.mxu0 0.0
    %827 = vmatpush1.msra.mxu0 %v805
    %828 = vmatprep.subr.mxu0 0.0
    %829 = vmatpush1.msra.mxu0 %v806
    %830 = vmatprep.subr.mxu0 0.0
    %831 = vmatpush1.msra.mxu0 %v807
    %832 = vmatprep.subr.mxu0 0.0
    %833 = vmatpush1.msra.mxu0 %v808
    %834 = vmatprep.subr.mxu0 0.0
    %835 = vmatpush1.msra.mxu0 %v809
    %836 = vmatprep.subr.mxu0 0.0
    %837 = vmatpush1.msra.mxu0 %v810
    %838 = vmatprep.subr.mxu0 0.0
    %839 = vmatpush1.msra.mxu0 %v811
    %840 = vmatprep.subr.mxu0 0.0
    %841 = vmatpush1.msra.mxu0 %v812
    %842 = vmatprep.subr.mxu0 0.0
    %843 = vmatpush1.msra.mxu0 %v813
    %844 = vmatprep.subr.mxu0 0.0
    %845 = vmatpush1.msra.mxu0 %v814
    %846 = vmatprep.subr.mxu0 0.0
    %847 = vmatpush1.msra.mxu0 %v815
    %848 = vmatprep.subr.mxu0 0.0
    %849 = vmatpush1.msra.mxu0 0.0
    %850 = vmatprep.subr.mxu0 0.0
    %851 = vmatpush1.msra.mxu0 0.0
    %852 = vmatprep.subr.mxu0 0.0
    %853 = vmatpush1.msra.mxu0 0.0
    %854 = vmatprep.subr.mxu0 0.0
    %855 = vmatpush1.msra.mxu0 0.0
    %856 = vmatprep.subr.mxu0 0.0
    %857 = vmatpush1.msra.mxu0 0.0
    %858 = vmatprep.subr.mxu0 0.0
    %859 = vmatpush1.msra.mxu0 0.0
    %860 = vmatprep.subr.mxu0 0.0
    %861 = vmatpush1.msra.mxu0 0.0
    %862 = vmatprep.subr.mxu0 0.0
    %863 = vmatpush1.msra.mxu0 0.0
    %864 = vmatprep.subr.mxu0 0.0
    %865 = vmatpush1.msra.mxu0 0.0
    %866 = vmatprep.subr.mxu0 0.0
    %867 = vmatpush1.msra.mxu0 0.0
    %868 = vmatprep.subr.mxu0 0.0
    %869 = vmatpush1.msra.mxu0 0.0
    %870 = vmatprep.subr.mxu0 0.0
    %871 = vmatpush1.msra.mxu0 0.0
    %872 = vmatprep.subr.mxu0 0.0
    %873 = vmatpush1.msra.mxu0 0.0
    %874 = vmatprep.subr.mxu0 0.0
    %875 = vmatpush1.msra.mxu0 0.0
    %876 = vmatprep.subr.mxu0 0.0
    %877 = vmatpush1.msra.mxu0 0.0
    %878 = vmatprep.subr.mxu0 0.0
    %879 = vmatpush1.msra.mxu0 0.0
    %880 = vmatprep.mubr.f32.mxu0 0.0
    %881 = vmatmul.mubr.f32.gmra.mrb[0].mxu0 %v34
    %v882 = vpop.f32.mrb[0].mxu0
    %v883 = vadd.f32 0.0, %v882
    %v884 = vpop.f32.mrb[0].mxu0
    %885 = vdwg.mxu0
    %886 = vset.pattern.permute.xlu0 8
    %887 = vperm.xlu0 %886, %v35
    %v888 = vpop.permute.xlu0 %887
    %v890 = vmul.f32 %v888, %v883
    %v891 = vadd.f32 %v796, %v890
    %s892 = sadd.s32 %s36, 9
    %s893 = smul.u32 %s892, 128
    %s894 = scalar_lea.vmem [#allocation3], %s893
    %v895 = vld [vmem:[%s894] sm:$0xff]
    %v896 = vld [vmem:[%s894 + $0x8] sm:$0xff]
    %v897 = vld [vmem:[%s894 + $0x10] sm:$0xff]
    %v898 = vld [vmem:[%s894 + $0x18] sm:$0xff]
    %v899 = vld [vmem:[%s894 + $0x20] sm:$0xff]
    %v900 = vld [vmem:[%s894 + $0x28] sm:$0xff]
    %v901 = vld [vmem:[%s894 + $0x30] sm:$0xff]
    %v902 = vld [vmem:[%s894 + $0x38] sm:$0xff]
    %v903 = vld [vmem:[%s894 + $0x40] sm:$0xff]
    %v904 = vld [vmem:[%s894 + $0x48] sm:$0xff]
    %v905 = vld [vmem:[%s894 + $0x50] sm:$0xff]
    %v906 = vld [vmem:[%s894 + $0x58] sm:$0xff]
    %v907 = vld [vmem:[%s894 + $0x60] sm:$0xff]
    %v908 = vld [vmem:[%s894 + $0x68] sm:$0xff]
    %v909 = vld [vmem:[%s894 + $0x70] sm:$0xff]
    %v910 = vld [vmem:[%s894 + $0x78] sm:$0xff]
    %911 = vmatprep.subr.mxu0 0.0
    %912 = vmatpush1.msra.mxu0 %v895
    %913 = vmatprep.subr.mxu0 0.0
    %914 = vmatpush1.msra.mxu0 %v896
    %915 = vmatprep.subr.mxu0 0.0
    %916 = vmatpush1.msra.mxu0 %v897
    %917 = vmatprep.subr.mxu0 0.0
    %918 = vmatpush1.msra.mxu0 %v898
    %919 = vmatprep.subr.mxu0 0.0
    %920 = vmatpush1.msra.mxu0 %v899
    %921 = vmatprep.subr.mxu0 0.0
    %922 = vmatpush1.msra.mxu0 %v900
    %923 = vmatprep.subr.mxu0 0.0
    %924 = vmatpush1.msra.mxu0 %v901
    %925 = vmatprep.subr.mxu0 0.0
    %926 = vmatpush1.msra.mxu0 %v902
    %927 = vmatprep.subr.mxu0 0.0
    %928 = vmatpush1.msra.mxu0 %v903
    %929 = vmatprep.subr.mxu0 0.0
    %930 = vmatpush1.msra.mxu0 %v904
    %931 = vmatprep.subr.mxu0 0.0
    %932 = vmatpush1.msra.mxu0 %v905
    %933 = vmatprep.subr.mxu0 0.0
    %934 = vmatpush1.msra.mxu0 %v906
    %935 = vmatprep.subr.mxu0 0.0
    %936 = vmatpush1.msra.mxu0 %v907
    %937 = vmatprep.subr.mxu0 0.0
    %938 = vmatpush1.msra.mxu0 %v908
    %939 = vmatprep.subr.mxu0 0.0
    %940 = vmatpush1.msra.mxu0 %v909
    %941 = vmatprep.subr.mxu0 0.0
    %942 = vmatpush1.msra.mxu0 %v910
    %943 = vmatprep.subr.mxu0 0.0
    %944 = vmatpush1.msra.mxu0 0.0
    %945 = vmatprep.subr.mxu0 0.0
    %946 = vmatpush1.msra.mxu0 0.0
    %947 = vmatprep.subr.mxu0 0.0
    %948 = vmatpush1.msra.mxu0 0.0
    %949 = vmatprep.subr.mxu0 0.0
    %950 = vmatpush1.msra.mxu0 0.0
    %951 = vmatprep.subr.mxu0 0.0
    %952 = vmatpush1.msra.mxu0 0.0
    %953 = vmatprep.subr.mxu0 0.0
    %954 = vmatpush1.msra.mxu0 0.0
    %955 = vmatprep.subr.mxu0 0.0
    %956 = vmatpush1.msra.mxu0 0.0
    %957 = vmatprep.subr.mxu0 0.0
    %958 = vmatpush1.msra.mxu0 0.0
    %959 = vmatprep.subr.mxu0 0.0
    %960 = vmatpush1.msra.mxu0 0.0
    %961 = vmatprep.subr.mxu0 0.0
    %962 = vmatpush1.msra.mxu0 0.0
    %963 = vmatprep.subr.mxu0 0.0
    %964 = vmatpush1.msra.mxu0 0.0
    %965 = vmatprep.subr.mxu0 0.0
    %966 = vmatpush1.msra.mxu0 0.0
    %967 = vmatprep.subr.mxu0 0.0
    %968 = vmatpush1.msra.mxu0 0.0
    %969 = vmatprep.subr.mxu0 0.0
    %970 = vmatpush1.msra.mxu0 0.0
    %971 = vmatprep.subr.mxu0 0.0
    %972 = vmatpush1.msra.mxu0 0.0
    %973 = vmatprep.subr.mxu0 0.0
    %974 = vmatpush1.msra.mxu0 0.0
    %975 = vmatprep.mubr.f32.mxu0 0.0
    %976 = vmatmul.mubr.f32.gmra.mrb[0].mxu0 %v34
    %v977 = vpop.f32.mrb[0].mxu0
    %v978 = vadd.f32 0.0, %v977
    %v979 = vpop.f32.mrb[0].mxu0
    %980 = vdwg.mxu0
    %981 = vset.pattern.permute.xlu0 9
    %982 = vperm.xlu0 %981, %v35
    %v983 = vpop.permute.xlu0 %982
    %v985 = vmul.f32 %v983, %v978
    %v986 = vadd.f32 %v891, %v985
    %s987 = sadd.s32 %s36, 10
    %s988 = smul.u32 %s987, 128
    %s989 = scalar_lea.vmem [#allocation3], %s988
    %v990 = vld [vmem:[%s989] sm:$0xff]
    %v991 = vld [vmem:[%s989 + $0x8] sm:$0xff]
    %v992 = vld [vmem:[%s989 + $0x10] sm:$0xff]
    %v993 = vld [vmem:[%s989 + $0x18] sm:$0xff]
    %v994 = vld [vmem:[%s989 + $0x20] sm:$0xff]
    %v995 = vld [vmem:[%s989 + $0x28] sm:$0xff]
    %v996 = vld [vmem:[%s989 + $0x30] sm:$0xff]
    %v997 = vld [vmem:[%s989 + $0x38] sm:$0xff]
    %v998 = vld [vmem:[%s989 + $0x40] sm:$0xff]
    %v999 = vld [vmem:[%s989 + $0x48] sm:$0xff]
    %v1000 = vld [vmem:[%s989 + $0x50] sm:$0xff]
    %v1001 = vld [vmem:[%s989 + $0x58] sm:$0xff]
    %v1002 = vld [vmem:[%s989 + $0x60] sm:$0xff]
    %v1003 = vld [vmem:[%s989 + $0x68] sm:$0xff]
    %v1004 = vld [vmem:[%s989 + $0x70] sm:$0xff]
    %v1005 = vld [vmem:[%s989 + $0x78] sm:$0xff]
    %1006 = vmatprep.subr.mxu0 0.0
    %1007 = vmatpush1.msra.mxu0 %v990
    %1008 = vmatprep.subr.mxu0 0.0
    %1009 = vmatpush1.msra.mxu0 %v991
    %1010 = vmatprep.subr.mxu0 0.0
    %1011 = vmatpush1.msra.mxu0 %v992
    %1012 = vmatprep.subr.mxu0 0.0
    %1013 = vmatpush1.msra.mxu0 %v993
    %1014 = vmatprep.subr.mxu0 0.0
    %1015 = vmatpush1.msra.mxu0 %v994
    %1016 = vmatprep.subr.mxu0 0.0
    %1017 = vmatpush1.msra.mxu0 %v995
    %1018 = vmatprep.subr.mxu0 0.0
    %1019 = vmatpush1.msra.mxu0 %v996
    %1020 = vmatprep.subr.mxu0 0.0
    %1021 = vmatpush1.msra.mxu0 %v997
    %1022 = vmatprep.subr.mxu0 0.0
    %1023 = vmatpush1.msra.mxu0 %v998
    %1024 = vmatprep.subr.mxu0 0.0
    %1025 = vmatpush1.msra.mxu0 %v999
    %1026 = vmatprep.subr.mxu0 0.0
    %1027 = vmatpush1.msra.mxu0 %v1000
    %1028 = vmatprep.subr.mxu0 0.0
    %1029 = vmatpush1.msra.mxu0 %v1001
    %1030 = vmatprep.subr.mxu0 0.0
    %1031 = vmatpush1.msra.mxu0 %v1002
    %1032 = vmatprep.subr.mxu0 0.0
    %1033 = vmatpush1.msra.mxu0 %v1003
    %1034 = vmatprep.subr.mxu0 0.0
    %1035 = vmatpush1.msra.mxu0 %v1004
    %1036 = vmatprep.subr.mxu0 0.0
    %1037 = vmatpush1.msra.mxu0 %v1005
    %1038 = vmatprep.subr.mxu0 0.0
    %1039 = vmatpush1.msra.mxu0 0.0
    %1040 = vmatprep.subr.mxu0 0.0
    %1041 = vmatpush1.msra.mxu0 0.0
    %1042 = vmatprep.subr.mxu0 0.0
    %1043 = vmatpush1.msra.mxu0 0.0
    %1044 = vmatprep.subr.mxu0 0.0
    %1045 = vmatpush1.msra.mxu0 0.0
    %1046 = vmatprep.subr.mxu0 0.0
    %1047 = vmatpush1.msra.mxu0 0.0
    %1048 = vmatprep.subr.mxu0 0.0
    %1049 = vmatpush1.msra.mxu0 0.0
    %1050 = vmatprep.subr.mxu0 0.0
    %1051 = vmatpush1.msra.mxu0 0.0
    %1052 = vmatprep.subr.mxu0 0.0
    %1053 = vmatpush1.msra.mxu0 0.0
    %1054 = vmatprep.subr.mxu0 0.0
    %1055 = vmatpush1.msra.mxu0 0.0
    %1056 = vmatprep.subr.mxu0 0.0
    %1057 = vmatpush1.msra.mxu0 0.0
    %1058 = vmatprep.subr.mxu0 0.0
    %1059 = vmatpush1.msra.mxu0 0.0
    %1060 = vmatprep.subr.mxu0 0.0
    %1061 = vmatpush1.msra.mxu0 0.0
    %1062 = vmatprep.subr.mxu0 0.0
    %1063 = vmatpush1.msra.mxu0 0.0
    %1064 = vmatprep.subr.mxu0 0.0
    %1065 = vmatpush1.msra.mxu0 0.0
    %1066 = vmatprep.subr.mxu0 0.0
    %1067 = vmatpush1.msra.mxu0 0.0
    %1068 = vmatprep.subr.mxu0 0.0
    %1069 = vmatpush1.msra.mxu0 0.0
    %1070 = vmatprep.mubr.f32.mxu0 0.0
    %1071 = vmatmul.mubr.f32.gmra.mrb[0].mxu0 %v34
    %v1072 = vpop.f32.mrb[0].mxu0
    %v1073 = vadd.f32 0.0, %v1072
    %v1074 = vpop.f32.mrb[0].mxu0
    %1075 = vdwg.mxu0
    %1076 = vset.pattern.permute.xlu0 10
    %1077 = vperm.xlu0 %1076, %v35
    %v1078 = vpop.permute.xlu0 %1077
    %v1080 = vmul.f32 %v1078, %v1073
    %v1081 = vadd.f32 %v986, %v1080
    %s1082 = sadd.s32 %s36, 11
    %s1083 = smul.u32 %s1082, 128
    %s1084 = scalar_lea.vmem [#allocation3], %s1083
    %v1085 = vld [vmem:[%s1084] sm:$0xff]
    %v1086 = vld [vmem:[%s1084 + $0x8] sm:$0xff]
    %v1087 = vld [vmem:[%s1084 + $0x10] sm:$0xff]
    %v1088 = vld [vmem:[%s1084 + $0x18] sm:$0xff]
    %v1089 = vld [vmem:[%s1084 + $0x20] sm:$0xff]
    %v1090 = vld [vmem:[%s1084 + $0x28] sm:$0xff]
    %v1091 = vld [vmem:[%s1084 + $0x30] sm:$0xff]
    %v1092 = vld [vmem:[%s1084 + $0x38] sm:$0xff]
    %v1093 = vld [vmem:[%s1084 + $0x40] sm:$0xff]
    %v1094 = vld [vmem:[%s1084 + $0x48] sm:$0xff]
    %v1095 = vld [vmem:[%s1084 + $0x50] sm:$0xff]
    %v1096 = vld [vmem:[%s1084 + $0x58] sm:$0xff]
    %v1097 = vld [vmem:[%s1084 + $0x60] sm:$0xff]
    %v1098 = vld [vmem:[%s1084 + $0x68] sm:$0xff]
    %v1099 = vld [vmem:[%s1084 + $0x70] sm:$0xff]
    %v1100 = vld [vmem:[%s1084 + $0x78] sm:$0xff]
    %1101 = vmatprep.subr.mxu0 0.0
    %1102 = vmatpush1.msra.mxu0 %v1085
    %1103 = vmatprep.subr.mxu0 0.0
    %1104 = vmatpush1.msra.mxu0 %v1086
    %1105 = vmatprep.subr.mxu0 0.0
    %1106 = vmatpush1.msra.mxu0 %v1087
    %1107 = vmatprep.subr.mxu0 0.0
    %1108 = vmatpush1.msra.mxu0 %v1088
    %1109 = vmatprep.subr.mxu0 0.0
    %1110 = vmatpush1.msra.mxu0 %v1089
    %1111 = vmatprep.subr.mxu0 0.0
    %1112 = vmatpush1.msra.mxu0 %v1090
    %1113 = vmatprep.subr.mxu0 0.0
    %1114 = vmatpush1.msra.mxu0 %v1091
    %1115 = vmatprep.subr.mxu0 0.0
    %1116 = vmatpush1.msra.mxu0 %v1092
    %1117 = vmatprep.subr.mxu0 0.0
    %1118 = vmatpush1.msra.mxu0 %v1093
    %1119 = vmatprep.subr.mxu0 0.0
    %1120 = vmatpush1.msra.mxu0 %v1094
    %1121 = vmatprep.subr.mxu0 0.0
    %1122 = vmatpush1.msra.mxu0 %v1095
    %1123 = vmatprep.subr.mxu0 0.0
    %1124 = vmatpush1.msra.mxu0 %v1096
    %1125 = vmatprep.subr.mxu0 0.0
    %1126 = vmatpush1.msra.mxu0 %v1097
    %1127 = vmatprep.subr.mxu0 0.0
    %1128 = vmatpush1.msra.mxu0 %v1098
    %1129 = vmatprep.subr.mxu0 0.0
    %1130 = vmatpush1.msra.mxu0 %v1099
    %1131 = vmatprep.subr.mxu0 0.0
    %1132 = vmatpush1.msra.mxu0 %v1100
    %1133 = vmatprep.subr.mxu0 0.0
    %1134 = vmatpush1.msra.mxu0 0.0
    %1135 = vmatprep.subr.mxu0 0.0
    %1136 = vmatpush1.msra.mxu0 0.0
    %1137 = vmatprep.subr.mxu0 0.0
    %1138 = vmatpush1.msra.mxu0 0.0
    %1139 = vmatprep.subr.mxu0 0.0
    %1140 = vmatpush1.msra.mxu0 0.0
    %1141 = vmatprep.subr.mxu0 0.0
    %1142 = vmatpush1.msra.mxu0 0.0
    %1143 = vmatprep.subr.mxu0 0.0
    %1144 = vmatpush1.msra.mxu0 0.0
    %1145 = vmatprep.subr.mxu0 0.0
    %1146 = vmatpush1.msra.mxu0 0.0
    %1147 = vmatprep.subr.mxu0 0.0
    %1148 = vmatpush1.msra.mxu0 0.0
    %1149 = vmatprep.subr.mxu0 0.0
    %1150 = vmatpush1.msra.mxu0 0.0
    %1151 = vmatprep.subr.mxu0 0.0
    %1152 = vmatpush1.msra.mxu0 0.0
    %1153 = vmatprep.subr.mxu0 0.0
    %1154 = vmatpush1.msra.mxu0 0.0
    %1155 = vmatprep.subr.mxu0 0.0
    %1156 = vmatpush1.msra.mxu0 0.0
    %1157 = vmatprep.subr.mxu0 0.0
    %1158 = vmatpush1.msra.mxu0 0.0
    %1159 = vmatprep.subr.mxu0 0.0
    %1160 = vmatpush1.msra.mxu0 0.0
    %1161 = vmatprep.subr.mxu0 0.0
    %1162 = vmatpush1.msra.mxu0 0.0
    %1163 = vmatprep.subr.mxu0 0.0
    %1164 = vmatpush1.msra.mxu0 0.0
    %1165 = vmatprep.mubr.f32.mxu0 0.0
    %1166 = vmatmul.mubr.f32.gmra.mrb[0].mxu0 %v34
    %v1167 = vpop.f32.mrb[0].mxu0
    %v1168 = vadd.f32 0.0, %v1167
    %v1169 = vpop.f32.mrb[0].mxu0
    %1170 = vdwg.mxu0
    %1171 = vset.pattern.permute.xlu0 11
    %1172 = vperm.xlu0 %1171, %v35
    %v1173 = vpop.permute.xlu0 %1172
    %v1175 = vmul.f32 %v1173, %v1168
    %v1176 = vadd.f32 %v1081, %v1175
    %s1177 = sadd.s32 %s36, 12
    %s1178 = smul.u32 %s1177, 128
    %s1179 = scalar_lea.vmem [#allocation3], %s1178
    %v1180 = vld [vmem:[%s1179] sm:$0xff]
    %v1181 = vld [vmem:[%s1179 + $0x8] sm:$0xff]
    %v1182 = vld [vmem:[%s1179 + $0x10] sm:$0xff]
    %v1183 = vld [vmem:[%s1179 + $0x18] sm:$0xff]
    %v1184 = vld [vmem:[%s1179 + $0x20] sm:$0xff]
    %v1185 = vld [vmem:[%s1179 + $0x28] sm:$0xff]
    %v1186 = vld [vmem:[%s1179 + $0x30] sm:$0xff]
    %v1187 = vld [vmem:[%s1179 + $0x38] sm:$0xff]
    %v1188 = vld [vmem:[%s1179 + $0x40] sm:$0xff]
    %v1189 = vld [vmem:[%s1179 + $0x48] sm:$0xff]
    %v1190 = vld [vmem:[%s1179 + $0x50] sm:$0xff]
    %v1191 = vld [vmem:[%s1179 + $0x58] sm:$0xff]
    %v1192 = vld [vmem:[%s1179 + $0x60] sm:$0xff]
    %v1193 = vld [vmem:[%s1179 + $0x68] sm:$0xff]
    %v1194 = vld [vmem:[%s1179 + $0x70] sm:$0xff]
    %v1195 = vld [vmem:[%s1179 + $0x78] sm:$0xff]
    %1196 = vmatprep.subr.mxu0 0.0
    %1197 = vmatpush1.msra.mxu0 %v1180
    %1198 = vmatprep.subr.mxu0 0.0
    %1199 = vmatpush1.msra.mxu0 %v1181
    %1200 = vmatprep.subr.mxu0 0.0
    %1201 = vmatpush1.msra.mxu0 %v1182
    %1202 = vmatprep.subr.mxu0 0.0
    %1203 = vmatpush1.msra.mxu0 %v1183
    %1204 = vmatprep.subr.mxu0 0.0
    %1205 = vmatpush1.msra.mxu0 %v1184
    %1206 = vmatprep.subr.mxu0 0.0
    %1207 = vmatpush1.msra.mxu0 %v1185
    %1208 = vmatprep.subr.mxu0 0.0
    %1209 = vmatpush1.msra.mxu0 %v1186
    %1210 = vmatprep.subr.mxu0 0.0
    %1211 = vmatpush1.msra.mxu0 %v1187
    %1212 = vmatprep.subr.mxu0 0.0
    %1213 = vmatpush1.msra.mxu0 %v1188
    %1214 = vmatprep.subr.mxu0 0.0
    %1215 = vmatpush1.msra.mxu0 %v1189
    %1216 = vmatprep.subr.mxu0 0.0
    %1217 = vmatpush1.msra.mxu0 %v1190
    %1218 = vmatprep.subr.mxu0 0.0
    %1219 = vmatpush1.msra.mxu0 %v1191
    %1220 = vmatprep.subr.mxu0 0.0
    %1221 = vmatpush1.msra.mxu0 %v1192
    %1222 = vmatprep.subr.mxu0 0.0
    %1223 = vmatpush1.msra.mxu0 %v1193
    %1224 = vmatprep.subr.mxu0 0.0
    %1225 = vmatpush1.msra.mxu0 %v1194
    %1226 = vmatprep.subr.mxu0 0.0
    %1227 = vmatpush1.msra.mxu0 %v1195
    %1228 = vmatprep.subr.mxu0 0.0
    %1229 = vmatpush1.msra.mxu0 0.0
    %1230 = vmatprep.subr.mxu0 0.0
    %1231 = vmatpush1.msra.mxu0 0.0
    %1232 = vmatprep.subr.mxu0 0.0
    %1233 = vmatpush1.msra.mxu0 0.0
    %1234 = vmatprep.subr.mxu0 0.0
    %1235 = vmatpush1.msra.mxu0 0.0
    %1236 = vmatprep.subr.mxu0 0.0
    %1237 = vmatpush1.msra.mxu0 0.0
    %1238 = vmatprep.subr.mxu0 0.0
    %1239 = vmatpush1.msra.mxu0 0.0
    %1240 = vmatprep.subr.mxu0 0.0
    %1241 = vmatpush1.msra.mxu0 0.0
    %1242 = vmatprep.subr.mxu0 0.0
    %1243 = vmatpush1.msra.mxu0 0.0
    %1244 = vmatprep.subr.mxu0 0.0
    %1245 = vmatpush1.msra.mxu0 0.0
    %1246 = vmatprep.subr.mxu0 0.0
    %1247 = vmatpush1.msra.mxu0 0.0
    %1248 = vmatprep.subr.mxu0 0.0
    %1249 = vmatpush1.msra.mxu0 0.0
    %1250 = vmatprep.subr.mxu0 0.0
    %1251 = vmatpush1.msra.mxu0 0.0
    %1252 = vmatprep.subr.mxu0 0.0
    %1253 = vmatpush1.msra.mxu0 0.0
    %1254 = vmatprep.subr.mxu0 0.0
    %1255 = vmatpush1.msra.mxu0 0.0
    %1256 = vmatprep.subr.mxu0 0.0
    %1257 = vmatpush1.msra.mxu0 0.0
    %1258 = vmatprep.subr.mxu0 0.0
    %1259 = vmatpush1.msra.mxu0 0.0
    %1260 = vmatprep.mubr.f32.mxu0 0.0
    %1261 = vmatmul.mubr.f32.gmra.mrb[0].mxu0 %v34
    %v1262 = vpop.f32.mrb[0].mxu0
    %v1263 = vadd.f32 0.0, %v1262
    %v1264 = vpop.f32.mrb[0].mxu0
    %1265 = vdwg.mxu0
    %1266 = vset.pattern.permute.xlu0 12
    %1267 = vperm.xlu0 %1266, %v35
    %v1268 = vpop.permute.xlu0 %1267
    %v1270 = vmul.f32 %v1268, %v1263
    %v1271 = vadd.f32 %v1176, %v1270
    %s1272 = sadd.s32 %s36, 13
    %s1273 = smul.u32 %s1272, 128
    %s1274 = scalar_lea.vmem [#allocation3], %s1273
    %v1275 = vld [vmem:[%s1274] sm:$0xff]
    %v1276 = vld [vmem:[%s1274 + $0x8] sm:$0xff]
    %v1277 = vld [vmem:[%s1274 + $0x10] sm:$0xff]
    %v1278 = vld [vmem:[%s1274 + $0x18] sm:$0xff]
    %v1279 = vld [vmem:[%s1274 + $0x20] sm:$0xff]
    %v1280 = vld [vmem:[%s1274 + $0x28] sm:$0xff]
    %v1281 = vld [vmem:[%s1274 + $0x30] sm:$0xff]
    %v1282 = vld [vmem:[%s1274 + $0x38] sm:$0xff]
    %v1283 = vld [vmem:[%s1274 + $0x40] sm:$0xff]
    %v1284 = vld [vmem:[%s1274 + $0x48] sm:$0xff]
    %v1285 = vld [vmem:[%s1274 + $0x50] sm:$0xff]
    %v1286 = vld [vmem:[%s1274 + $0x58] sm:$0xff]
    %v1287 = vld [vmem:[%s1274 + $0x60] sm:$0xff]
    %v1288 = vld [vmem:[%s1274 + $0x68] sm:$0xff]
    %v1289 = vld [vmem:[%s1274 + $0x70] sm:$0xff]
    %v1290 = vld [vmem:[%s1274 + $0x78] sm:$0xff]
    %1291 = vmatprep.subr.mxu0 0.0
    %1292 = vmatpush1.msra.mxu0 %v1275
    %1293 = vmatprep.subr.mxu0 0.0
    %1294 = vmatpush1.msra.mxu0 %v1276
    %1295 = vmatprep.subr.mxu0 0.0
    %1296 = vmatpush1.msra.mxu0 %v1277
    %1297 = vmatprep.subr.mxu0 0.0
    %1298 = vmatpush1.msra.mxu0 %v1278
    %1299 = vmatprep.subr.mxu0 0.0
    %1300 = vmatpush1.msra.mxu0 %v1279
    %1301 = vmatprep.subr.mxu0 0.0
    %1302 = vmatpush1.msra.mxu0 %v1280
    %1303 = vmatprep.subr.mxu0 0.0
    %1304 = vmatpush1.msra.mxu0 %v1281
    %1305 = vmatprep.subr.mxu0 0.0
    %1306 = vmatpush1.msra.mxu0 %v1282
    %1307 = vmatprep.subr.mxu0 0.0
    %1308 = vmatpush1.msra.mxu0 %v1283
    %1309 = vmatprep.subr.mxu0 0.0
    %1310 = vmatpush1.msra.mxu0 %v1284
    %1311 = vmatprep.subr.mxu0 0.0
    %1312 = vmatpush1.msra.mxu0 %v1285
    %1313 = vmatprep.subr.mxu0 0.0
    %1314 = vmatpush1.msra.mxu0 %v1286
    %1315 = vmatprep.subr.mxu0 0.0
    %1316 = vmatpush1.msra.mxu0 %v1287
    %1317 = vmatprep.subr.mxu0 0.0
    %1318 = vmatpush1.msra.mxu0 %v1288
    %1319 = vmatprep.subr.mxu0 0.0
    %1320 = vmatpush1.msra.mxu0 %v1289
    %1321 = vmatprep.subr.mxu0 0.0
    %1322 = vmatpush1.msra.mxu0 %v1290
    %1323 = vmatprep.subr.mxu0 0.0
    %1324 = vmatpush1.msra.mxu0 0.0
    %1325 = vmatprep.subr.mxu0 0.0
    %1326 = vmatpush1.msra.mxu0 0.0
    %1327 = vmatprep.subr.mxu0 0.0
    %1328 = vmatpush1.msra.mxu0 0.0
    %1329 = vmatprep.subr.mxu0 0.0
    %1330 = vmatpush1.msra.mxu0 0.0
    %1331 = vmatprep.subr.mxu0 0.0
    %1332 = vmatpush1.msra.mxu0 0.0
    %1333 = vmatprep.subr.mxu0 0.0
    %1334 = vmatpush1.msra.mxu0 0.0
    %1335 = vmatprep.subr.mxu0 0.0
    %1336 = vmatpush1.msra.mxu0 0.0
    %1337 = vmatprep.subr.mxu0 0.0
    %1338 = vmatpush1.msra.mxu0 0.0
    %1339 = vmatprep.subr.mxu0 0.0
    %1340 = vmatpush1.msra.mxu0 0.0
    %1341 = vmatprep.subr.mxu0 0.0
    %1342 = vmatpush1.msra.mxu0 0.0
    %1343 = vmatprep.subr.mxu0 0.0
    %1344 = vmatpush1.msra.mxu0 0.0
    %1345 = vmatprep.subr.mxu0 0.0
    %1346 = vmatpush1.msra.mxu0 0.0
    %1347 = vmatprep.subr.mxu0 0.0
    %1348 = vmatpush1.msra.mxu0 0.0
    %1349 = vmatprep.subr.mxu0 0.0
    %1350 = vmatpush1.msra.mxu0 0.0
    %1351 = vmatprep.subr.mxu0 0.0
    %1352 = vmatpush1.msra.mxu0 0.0
    %1353 = vmatprep.subr.mxu0 0.0
    %1354 = vmatpush1.msra.mxu0 0.0
    %1355 = vmatprep.mubr.f32.mxu0 0.0
    %1356 = vmatmul.mubr.f32.gmra.mrb[0].mxu0 %v34
    %v1357 = vpop.f32.mrb[0].mxu0
    %v1358 = vadd.f32 0.0, %v1357
    %v1359 = vpop.f32.mrb[0].mxu0
    %1360 = vdwg.mxu0
    %1361 = vset.pattern.permute.xlu0 13
    %1362 = vperm.xlu0 %1361, %v35
    %v1363 = vpop.permute.xlu0 %1362
    %v1365 = vmul.f32 %v1363, %v1358
    %v1366 = vadd.f32 %v1271, %v1365
    %s1367 = sadd.s32 %s36, 14
    %s1368 = smul.u32 %s1367, 128
    %s1369 = scalar_lea.vmem [#allocation3], %s1368
    %v1370 = vld [vmem:[%s1369] sm:$0xff]
    %v1371 = vld [vmem:[%s1369 + $0x8] sm:$0xff]
    %v1372 = vld [vmem:[%s1369 + $0x10] sm:$0xff]
    %v1373 = vld [vmem:[%s1369 + $0x18] sm:$0xff]
    %v1374 = vld [vmem:[%s1369 + $0x20] sm:$0xff]
    %v1375 = vld [vmem:[%s1369 + $0x28] sm:$0xff]
    %v1376 = vld [vmem:[%s1369 + $0x30] sm:$0xff]
    %v1377 = vld [vmem:[%s1369 + $0x38] sm:$0xff]
    %v1378 = vld [vmem:[%s1369 + $0x40] sm:$0xff]
    %v1379 = vld [vmem:[%s1369 + $0x48] sm:$0xff]
    %v1380 = vld [vmem:[%s1369 + $0x50] sm:$0xff]
    %v1381 = vld [vmem:[%s1369 + $0x58] sm:$0xff]
    %v1382 = vld [vmem:[%s1369 + $0x60] sm:$0xff]
    %v1383 = vld [vmem:[%s1369 + $0x68] sm:$0xff]
    %v1384 = vld [vmem:[%s1369 + $0x70] sm:$0xff]
    %v1385 = vld [vmem:[%s1369 + $0x78] sm:$0xff]
    %1386 = vmatprep.subr.mxu0 0.0
    %1387 = vmatpush1.msra.mxu0 %v1370
    %1388 = vmatprep.subr.mxu0 0.0
    %1389 = vmatpush1.msra.mxu0 %v1371
    %1390 = vmatprep.subr.mxu0 0.0
    %1391 = vmatpush1.msra.mxu0 %v1372
    %1392 = vmatprep.subr.mxu0 0.0
    %1393 = vmatpush1.msra.mxu0 %v1373
    %1394 = vmatprep.subr.mxu0 0.0
    %1395 = vmatpush1.msra.mxu0 %v1374
    %1396 = vmatprep.subr.mxu0 0.0
    %1397 = vmatpush1.msra.mxu0 %v1375
    %1398 = vmatprep.subr.mxu0 0.0
    %1399 = vmatpush1.msra.mxu0 %v1376
    %1400 = vmatprep.subr.mxu0 0.0
    %1401 = vmatpush1.msra.mxu0 %v1377
    %1402 = vmatprep.subr.mxu0 0.0
    %1403 = vmatpush1.msra.mxu0 %v1378
    %1404 = vmatprep.subr.mxu0 0.0
    %1405 = vmatpush1.msra.mxu0 %v1379
    %1406 = vmatprep.subr.mxu0 0.0
    %1407 = vmatpush1.msra.mxu0 %v1380
    %1408 = vmatprep.subr.mxu0 0.0
    %1409 = vmatpush1.msra.mxu0 %v1381
    %1410 = vmatprep.subr.mxu0 0.0
    %1411 = vmatpush1.msra.mxu0 %v1382
    %1412 = vmatprep.subr.mxu0 0.0
    %1413 = vmatpush1.msra.mxu0 %v1383
    %1414 = vmatprep.subr.mxu0 0.0
    %1415 = vmatpush1.msra.mxu0 %v1384
    %1416 = vmatprep.subr.mxu0 0.0
    %1417 = vmatpush1.msra.mxu0 %v1385
    %1418 = vmatprep.subr.mxu0 0.0
    %1419 = vmatpush1.msra.mxu0 0.0
    %1420 = vmatprep.subr.mxu0 0.0
    %1421 = vmatpush1.msra.mxu0 0.0
    %1422 = vmatprep.subr.mxu0 0.0
    %1423 = vmatpush1.msra.mxu0 0.0
    %1424 = vmatprep.subr.mxu0 0.0
    %1425 = vmatpush1.msra.mxu0 0.0
    %1426 = vmatprep.subr.mxu0 0.0
    %1427 = vmatpush1.msra.mxu0 0.0
    %1428 = vmatprep.subr.mxu0 0.0
    %1429 = vmatpush1.msra.mxu0 0.0
    %1430 = vmatprep.subr.mxu0 0.0
    %1431 = vmatpush1.msra.mxu0 0.0
    %1432 = vmatprep.subr.mxu0 0.0
    %1433 = vmatpush1.msra.mxu0 0.0
    %1434 = vmatprep.subr.mxu0 0.0
    %1435 = vmatpush1.msra.mxu0 0.0
    %1436 = vmatprep.subr.mxu0 0.0
    %1437 = vmatpush1.msra.mxu0 0.0
    %1438 = vmatprep.subr.mxu0 0.0
    %1439 = vmatpush1.msra.mxu0 0.0
    %1440 = vmatprep.subr.mxu0 0.0
    %1441 = vmatpush1.msra.mxu0 0.0
    %1442 = vmatprep.subr.mxu0 0.0
    %1443 = vmatpush1.msra.mxu0 0.0
    %1444 = vmatprep.subr.mxu0 0.0
    %1445 = vmatpush1.msra.mxu0 0.0
    %1446 = vmatprep.subr.mxu0 0.0
    %1447 = vmatpush1.msra.mxu0 0.0
    %1448 = vmatprep.subr.mxu0 0.0
    %1449 = vmatpush1.msra.mxu0 0.0
    %1450 = vmatprep.mubr.f32.mxu0 0.0
    %1451 = vmatmul.mubr.f32.gmra.mrb[0].mxu0 %v34
    %v1452 = vpop.f32.mrb[0].mxu0
    %v1453 = vadd.f32 0.0, %v1452
    %v1454 = vpop.f32.mrb[0].mxu0
    %1455 = vdwg.mxu0
    %1456 = vset.pattern.permute.xlu0 14
    %1457 = vperm.xlu0 %1456, %v35
    %v1458 = vpop.permute.xlu0 %1457
    %v1460 = vmul.f32 %v1458, %v1453
    %v1461 = vadd.f32 %v1366, %v1460
    %s1462 = sadd.s32 %s36, 15
    %s1463 = smul.u32 %s1462, 128
    %s1464 = scalar_lea.vmem [#allocation3], %s1463
    %v1465 = vld [vmem:[%s1464] sm:$0xff]
    %v1466 = vld [vmem:[%s1464 + $0x8] sm:$0xff]
    %v1467 = vld [vmem:[%s1464 + $0x10] sm:$0xff]
    %v1468 = vld [vmem:[%s1464 + $0x18] sm:$0xff]
    %v1469 = vld [vmem:[%s1464 + $0x20] sm:$0xff]
    %v1470 = vld [vmem:[%s1464 + $0x28] sm:$0xff]
    %v1471 = vld [vmem:[%s1464 + $0x30] sm:$0xff]
    %v1472 = vld [vmem:[%s1464 + $0x38] sm:$0xff]
    %v1473 = vld [vmem:[%s1464 + $0x40] sm:$0xff]
    %v1474 = vld [vmem:[%s1464 + $0x48] sm:$0xff]
    %v1475 = vld [vmem:[%s1464 + $0x50] sm:$0xff]
    %v1476 = vld [vmem:[%s1464 + $0x58] sm:$0xff]
    %v1477 = vld [vmem:[%s1464 + $0x60] sm:$0xff]
    %v1478 = vld [vmem:[%s1464 + $0x68] sm:$0xff]
    %v1479 = vld [vmem:[%s1464 + $0x70] sm:$0xff]
    %v1480 = vld [vmem:[%s1464 + $0x78] sm:$0xff]
    %1481 = vmatprep.subr.mxu0 0.0
    %1482 = vmatpush1.msra.mxu0 %v1465
    %1483 = vmatprep.subr.mxu0 0.0
    %1484 = vmatpush1.msra.mxu0 %v1466
    %1485 = vmatprep.subr.mxu0 0.0
    %1486 = vmatpush1.msra.mxu0 %v1467
    %1487 = vmatprep.subr.mxu0 0.0
    %1488 = vmatpush1.msra.mxu0 %v1468
    %1489 = vmatprep.subr.mxu0 0.0
    %1490 = vmatpush1.msra.mxu0 %v1469
    %1491 = vmatprep.subr.mxu0 0.0
    %1492 = vmatpush1.msra.mxu0 %v1470
    %1493 = vmatprep.subr.mxu0 0.0
    %1494 = vmatpush1.msra.mxu0 %v1471
    %1495 = vmatprep.subr.mxu0 0.0
    %1496 = vmatpush1.msra.mxu0 %v1472
    %1497 = vmatprep.subr.mxu0 0.0
    %1498 = vmatpush1.msra.mxu0 %v1473
    %1499 = vmatprep.subr.mxu0 0.0
    %1500 = vmatpush1.msra.mxu0 %v1474
    %1501 = vmatprep.subr.mxu0 0.0
    %1502 = vmatpush1.msra.mxu0 %v1475
    %1503 = vmatprep.subr.mxu0 0.0
    %1504 = vmatpush1.msra.mxu0 %v1476
    %1505 = vmatprep.subr.mxu0 0.0
    %1506 = vmatpush1.msra.mxu0 %v1477
    %1507 = vmatprep.subr.mxu0 0.0
    %1508 = vmatpush1.msra.mxu0 %v1478
    %1509 = vmatprep.subr.mxu0 0.0
    %1510 = vmatpush1.msra.mxu0 %v1479
    %1511 = vmatprep.subr.mxu0 0.0
    %1512 = vmatpush1.msra.mxu0 %v1480
    %1513 = vmatprep.subr.mxu0 0.0
    %1514 = vmatpush1.msra.mxu0 0.0
    %1515 = vmatprep.subr.mxu0 0.0
    %1516 = vmatpush1.msra.mxu0 0.0
    %1517 = vmatprep.subr.mxu0 0.0
    %1518 = vmatpush1.msra.mxu0 0.0
    %1519 = vmatprep.subr.mxu0 0.0
    %1520 = vmatpush1.msra.mxu0 0.0
    %1521 = vmatprep.subr.mxu0 0.0
    %1522 = vmatpush1.msra.mxu0 0.0
    %1523 = vmatprep.subr.mxu0 0.0
    %1524 = vmatpush1.msra.mxu0 0.0
    %1525 = vmatprep.subr.mxu0 0.0
    %1526 = vmatpush1.msra.mxu0 0.0
    %1527 = vmatprep.subr.mxu0 0.0
    %1528 = vmatpush1.msra.mxu0 0.0
    %1529 = vmatprep.subr.mxu0 0.0
    %1530 = vmatpush1.msra.mxu0 0.0
    %1531 = vmatprep.subr.mxu0 0.0
    %1532 = vmatpush1.msra.mxu0 0.0
    %1533 = vmatprep.subr.mxu0 0.0
    %1534 = vmatpush1.msra.mxu0 0.0
    %1535 = vmatprep.subr.mxu0 0.0
    %1536 = vmatpush1.msra.mxu0 0.0
    %1537 = vmatprep.subr.mxu0 0.0
    %1538 = vmatpush1.msra.mxu0 0.0
    %1539 = vmatprep.subr.mxu0 0.0
    %1540 = vmatpush1.msra.mxu0 0.0
    %1541 = vmatprep.subr.mxu0 0.0
    %1542 = vmatpush1.msra.mxu0 0.0
    %1543 = vmatprep.subr.mxu0 0.0
    %1544 = vmatpush1.msra.mxu0 0.0
    %1545 = vmatprep.mubr.f32.mxu0 0.0
    %1546 = vmatmul.mubr.f32.gmra.mrb[0].mxu0 %v34
    %v1547 = vpop.f32.mrb[0].mxu0
    %v1548 = vadd.f32 0.0, %v1547
    %v1549 = vpop.f32.mrb[0].mxu0
    %1550 = vdwg.mxu0
    %1551 = vset.pattern.permute.xlu0 15
    %1552 = vperm.xlu0 %1551, %v35
    %v1553 = vpop.permute.xlu0 %1552
    %v1555 = vmul.f32 %v1553, %v1548
    %v1556 = vadd.f32 %v1461, %v1555
    %v1557 = vld [vmem:[#allocation2] sm:$0xff]
    %v1558 = vadd.f32 %v1557, %v1556
    %1559 = vst [vmem:[#allocation2] sm:$0xff] %v1558
    // Predicated region
    $region22: #{forward.1} parent=1 // pred_check
      %p1560 = pneg %p29
    $region23: #{forward.1} parent=1 // pred_check_branch
      %1562 = sbr.rel (%p1560) target = $region25
    $region24: #{forward.1} parent=1 // pred_region
      %v1563 = vld [vmem:[#allocation2] sm:$0xff]
      %1564 = vst [vmem:[#allocation6] sm:$0xff] %v1563
    $region25: #{forward.1} parent=1 // pred_fallthru
      _
    // Predicated region
    $region26: #{forward.1} parent=1 // pred_check
      _
    $region27: #{forward.1} parent=1 // pred_check_branch
      %1566 = sbr.rel (0) target = $region29
    $region28: #{forward.1} parent=1 // pred_region
      %s1568 = ssub.s32 128, 128
      %1569 = vsyncadd [#allocation5], %s1568
      %s1571 = sshll.u32 [#allocation6], 4
      %s1572 = int_to_ptr.vmem [resolvable:$true] %s1571
      %1574 = dma.vmem_to_hbm [thread:$0]  %s1572, 128, %s3, [#allocation5]
    $region29: #{forward.1} parent=1 // pred_fallthru
      _
    // Predicated region
    $region30: #{forward.1} parent=1 // pred_check
      _
    $region31: #{forward.1} parent=1 // pred_check_branch
      %1576 = sbr.rel (0) target = $region33
    $region32: #{forward.1} parent=1 // pred_region
      %1577 = dma.done [#allocation5], 128
    $region33: #{forward.1} parent=1 // pred_fallthru
      _
    %1578 = vsyncpa [#allocation4], 1
    %1579 = vsyncpa [#allocation5], 1

</llo_original>
